<compile_context>
chip_gen: v6e
topology: v6e:2x2x1
jax: 0.10.0
libtpu: 0.0.40
codegen_flags: <defaults>
</compile_context>

<pallas_src>
import jax
import jax.numpy as jnp
from jax import lax
from jax.experimental import pallas as pl
from jax.experimental.pallas import tpu as pltpu


def _round_up(x, m):
    return (x + m - 1) // m * m


def _vmem_limit_bytes():
    # ~75% of physical VMEM: ~96 MiB on v5e/v6e (128 MiB), ~48 MiB on v7x (64 MiB)
    try:
        cap = int(pltpu.get_tpu_info().vmem_capacity_bytes)
    except Exception:
        cap = 64 * 1024 * 1024
    return cap * 3 // 4


# -----------------------------------------------------------------------------
# Fused kernel (tiled over span tiles):
#   word_attn = doc @ attn_w^T + attn_b            <-- the torch `Projection`
#   head      = softmax_masked(word_attn) @ doc    (normalization folded in)
#   hidden    = relu([start|end] @ w0_se + head @ w0_head + width_h + b0)
#   score     = w1 . hidden + (width_prior_score + b1)
# -----------------------------------------------------------------------------
def _fused_span_kernel(starts_ref, ends_ref, doc_ref, attn_w_ref, attn_b_ref,
                       se_ee_ref, width_h_ref, w0_se_ref, w0_head_ref,
                       b0_ref, w1_ref, extra_ref, score_ref, head_ref):
    tn, e = head_ref.shape
    w = doc_ref.shape[0]

    # --- Projection (torch `Projection`: Linear(E, 1)) ---
    # trivial matvec recomputed per span tile (doc is already resident here;
    # cheaper than a separate kernel + HBM round trip). Bias from SMEM.
    word_attn = lax.dot_general(
        attn_w_ref[...], doc_ref[...], (((1,), (1,)), ((), ())),
        preferred_element_type=jnp.float32) + attn_b_ref[0, 0]      # [1, W] f32

    # --- masked softmax attention over words (per span) ---
    starts = starts_ref[...]                                        # [TN, 1] i32
    ends = ends_ref[...]                                            # [TN, 1] i32
    word_idx = lax.broadcasted_iota(jnp.int32, (tn, w), 1)          # [TN, W]
    mask = (word_idx >= starts) & (word_idx <= ends)                # [TN, W]
    logits = jnp.where(mask, word_attn, jnp.float32(-1e30))         # finite: no NaNs
    m = jnp.max(logits, axis=1, keepdims=True)
    p = jnp.exp(logits - m)                                         # f32 elementwise
    l = jnp.sum(p, axis=1, keepdims=True)                           # [TN, 1]
    acc = jnp.dot(p.astype(jnp.bfloat16), doc_ref[...],             # bf16 MXU operands
                  preferred_element_type=jnp.float32)               # [TN, E] f32
    head_bf = (acc * pl.reciprocal(l, approx=True)).astype(jnp.bfloat16)
    head_ref[...] = head_bf                                         # bf16 writeback

    # --- span FFNN (the [TN, 3E+F] concat is never materialized in HBM) ---
    hid = jnp.dot(se_ee_ref[...], w0_se_ref[...],
                  preferred_element_type=jnp.float32)
    hid = hid + jnp.dot(head_bf, w0_head_ref[...],
                        preferred_element_type=jnp.float32)
    hid = hid + width_h_ref[...].astype(jnp.float32) + b0_ref[...]
    hid = jnp.maximum(hid, 0.0)                                     # [TN, H] f32
    # lane-dense epilogue: [1, TN] = w1[1, H] contracted with hid[TN, H]
    s_row = lax.dot_general(w1_ref[...], hid, (((1,), (1,)), ((), ())),
                            preferred_element_type=jnp.float32)
    score_ref[...] = s_row + extra_ref[...]                         # + width prior + b1


def _fused_call(starts_col, ends_col, doc_bf16, attn_w_row, attn_b,
                se_ee, width_h, w0_se, w0_head, b0_row, w1_row, extra_row,
                *, tn, single_buffer_resident):
    s_pad = starts_col.shape[0]
    w_pad, e = doc_bf16.shape
    h_dim = b0_row.shape[-1]
    g = s_pad // tn

    def resident(shape):
        # constant-index blocks: single-buffer to halve their VMEM footprint
        if single_buffer_resident:
            return pl.BlockSpec(shape, lambda i: (0, 0),
                                pipeline_mode=pl.Buffered(1))
        return pl.BlockSpec(shape, lambda i: (0, 0))

    return pl.pallas_call(
        _fused_span_kernel,
        out_shape=(jax.ShapeDtypeStruct((1, s_pad), jnp.float32),   # scores (lane-dense)
                   jax.ShapeDtypeStruct((s_pad, e), jnp.bfloat16)), # attention head
        grid=(g,),
        in_specs=[
            pl.BlockSpec((tn, 1), lambda i: (i, 0)),                # starts tile
            pl.BlockSpec((tn, 1), lambda i: (i, 0)),                # ends tile
            resident((w_pad, e)),                                   # doc, bf16, resident
            resident((1, e)),                                       # attn weight (Projection)
            pl.BlockSpec(memory_space=pltpu.MemorySpace.SMEM),      # attn bias (scalar)
            pl.BlockSpec((tn, 2 * e), lambda i: (i, 0)),            # [start|end] embs tile
            pl.BlockSpec((tn, h_dim), lambda i: (i, 0)),            # width_embs @ w0_width tile
            resident((2 * e, h_dim)),                               # w0[:2E]
            resident((e, h_dim)),                                   # w0[2E+F:]
            resident((1, h_dim)),                                   # b0
            resident((1, h_dim)),                                   # w1
            pl.BlockSpec((1, tn), lambda i: (0, i)),                # width prior + b1 (lane-dense)
        ],
        out_specs=(pl.BlockSpec((1, tn), lambda i: (0, i)),
                   pl.BlockSpec((tn, e), lambda i: (i, 0))),
        compiler_params=pltpu.CompilerParams(
            dimension_semantics=("parallel",),
            vmem_limit_bytes=_vmem_limit_bytes()),
    )(starts_col, ends_col, doc_bf16, attn_w_row, attn_b,
      se_ee, width_h, w0_se, w0_head, b0_row, w1_row, extra_row)


def fused_span_scores(*operands, tn=128):
    try:
        return _fused_call(*operands, tn=tn, single_buffer_resident=True)
    except Exception:
        # this Pallas build rejected pl.Buffered(1); use default double buffering
        return _fused_call(*operands, tn=tn, single_buffer_resident=False)


# -----------------------------------------------------------------------------
# SpanScorer forward (XLA glue + the fused kernel)
# -----------------------------------------------------------------------------
def span_scorer_forward(params, starts, ends, embs, use_gold_spans=False,
                        top_span_ratio=0.4, span_tile=128):
    doc = embs[0].astype(jnp.float32)                               # [W, E]
    num_words, e = doc.shape
    s = starts.shape[0]
    n_buckets, f = params["span_width_embeddings"].shape
    h_dim = params["span_b0"].shape[-1]

    starts = starts.astype(jnp.int32)
    ends = ends.astype(jnp.int32)

    # pad words / spans to (8,128)-friendly sizes; padded words never fall
    # inside a span mask, padded spans (start=end=0) are sliced off at the end.
    w_pad = _round_up(num_words, 128)
    doc_bf16 = jnp.pad(doc, ((0, w_pad - num_words), (0, 0))).astype(jnp.bfloat16)

    s_pad = _round_up(s, span_tile)
    starts_pad = jnp.pad(starts, (0, s_pad - s))
    ends_pad = jnp.pad(ends, (0, s_pad - s))

    # gathers stay in plain JAX, from the bf16 doc (halves gather traffic)
    start_embs = jnp.take(doc_bf16, starts_pad, axis=0)             # [Sp, E] bf16
    end_embs = jnp.take(doc_bf16, ends_pad, axis=0)                 # [Sp, E] bf16
    se_ee = jnp.concatenate([start_embs, end_embs], axis=1)         # [Sp, 2E] bf16

    width_idx = jnp.minimum(ends_pad - starts_pad, n_buckets - 1)   # clamp(max=29)
    width_embs = jnp.take(params["span_width_embeddings"], width_idx, axis=0)

    # FFNN weight split so the [S, 3E+F] concat never hits HBM; the K=F width
    # matmul is pre-projected at bucket level (tiny, done by XLA).
    w0 = params["span_w0"].astype(jnp.float32)
    w0_se = w0[: 2 * e].astype(jnp.bfloat16)                        # [2E, H]
    w0_head = w0[2 * e + f:].astype(jnp.bfloat16)                   # [E, H]
    width_h_table = params["span_width_embeddings"] @ w0[2 * e: 2 * e + f]   # [B, H]
    width_h = jnp.take(width_h_table, width_idx, axis=0).astype(jnp.bfloat16)

    # 30-bucket width-prior FFNN in plain JAX (a pallas launch is pure overhead);
    # its per-span score + the final bias feed the kernel's lane-dense epilogue.
    prior = params["span_width_prior_embeddings"]
    prior_h = jnp.maximum(prior @ params["width_w0"] + params["width_b0"], 0.0)
    width_scores_all = (prior_h @ params["width_w1"]
                        + params["width_b1"]).reshape(-1)           # [B]
    extra = jnp.take(width_scores_all, width_idx) + params["span_b1"].reshape(())
    extra_row = extra.reshape(1, s_pad).astype(jnp.float32)

    scores_row, head_pad = fused_span_scores(
        starts_pad.reshape(s_pad, 1), ends_pad.reshape(s_pad, 1),
        doc_bf16,
        params["attn_w"].astype(jnp.bfloat16).reshape(1, e),
        params["attn_b"].astype(jnp.float32).reshape(1, 1),
        se_ee, width_h, w0_se, w0_head,
        params["span_b0"].astype(jnp.float32).reshape(1, h_dim),
        params["span_w1"].astype(jnp.float32).reshape(1, h_dim),
        extra_row, tn=span_tile)

    total_scores = scores_row.reshape(s_pad)[:s]                    # drop padded spans

    def concat_embs(row_idx):
        return jnp.concatenate(
            [start_embs[row_idx].astype(jnp.float32),
             end_embs[row_idx].astype(jnp.float32),
             width_embs[row_idx].astype(jnp.float32),
             head_pad[row_idx].astype(jnp.float32)], axis=-1)

    if use_gold_spans:
        return concat_embs(jnp.arange(s)), total_scores, None

    k = min(int(num_words * top_span_ratio), s)
    # TODO(synk): top_k stays in plain JAX (no Pallas sort/top-k primitive on TPU)
    top_scores, top_k_indices = lax.top_k(total_scores, k)
    return concat_embs(top_k_indices), top_scores, top_k_indices


# -----------------------------------------------------------------------------
# Pure-JAX f32 reference (tolerance check: bf16 MXU + approx reciprocal ->
# the kernel will not bit-match).
# -----------------------------------------------------------------------------
def reference_forward(params, starts, ends, embs):
    doc = embs[0].astype(jnp.float32)
    num_words, e = doc.shape
    n_buckets = params["span_width_embeddings"].shape[0]
    word_attn = (doc @ params["attn_w"].T + params["attn_b"]).reshape(-1)  # [W]
    idx = jnp.arange(num_words)
    mask = (idx[None, :] >= starts[:, None]) & (idx[None, :] <= ends[:, None])
    logits = jnp.where(mask, word_attn[None, :], -jnp.inf)
    p = jax.nn.softmax(logits, axis=1)
    head = p @ doc                                                  # [S, E]
    start_e = doc[starts]
    end_e = doc[ends]
    width_idx = jnp.minimum(ends - starts, n_buckets - 1)
    width_e = params["span_width_embeddings"][width_idx]
    x = jnp.concatenate([start_e, end_e, width_e, head], axis=1)    # [S, 3E+F]
    h = jnp.maximum(x @ params["span_w0"] + params["span_b0"], 0.0)
    span_scores = (h @ params["span_w1"] + params["span_b1"]).reshape(-1)
    ph = jnp.maximum(params["span_width_prior_embeddings"] @ params["width_w0"]
                     + params["width_b0"], 0.0)
    prior_scores = (ph @ params["width_w1"] + params["width_b1"]).reshape(-1)
    return x, span_scores + prior_scores[width_idx]


# -----------------------------------------------------------------------------
# Deterministic parameter init (shapes from SpanScorer.__init__)
# -----------------------------------------------------------------------------
def init_params(key, token_emb_size, feature_size, output_size, width_buckets):
    E, F, H, B = token_emb_size, feature_size, output_size, width_buckets
    mention_in = 3 * E + F
    ks = jax.random.split(key, 12)
    s = 0.1
    return {
        "span_width_embeddings":       s * jax.random.normal(ks[0], (B, F), jnp.float32),
        "span_width_prior_embeddings": s * jax.random.normal(ks[1], (B, F), jnp.float32),
        # attnProjection (torch `Projection`): Linear(E, 1)
        "attn_w":  s * jax.random.normal(ks[2], (1, E), jnp.float32),
        "attn_b":  s * jax.random.normal(ks[3], (1, 1), jnp.float32),
        # spanFFNN: Linear(3E+F, H) -> ReLU -> Linear(H, 1)
        "span_w0": s * jax.random.normal(ks[4], (mention_in, H), jnp.float32),
        "span_b0": s * jax.random.normal(ks[5], (1, H), jnp.float32),
        "span_w1": s * jax.random.normal(ks[6], (H, 1), jnp.float32),
        "span_b1": s * jax.random.normal(ks[7], (1, 1), jnp.float32),
        # widthFFNN: Linear(F, H) -> ReLU -> Linear(H, 1)
        "width_w0": s * jax.random.normal(ks[8], (F, H), jnp.float32),
        "width_b0": s * jax.random.normal(ks[9], (1, H), jnp.float32),
        "width_w1": s * jax.random.normal(ks[10], (H, 1), jnp.float32),
        "width_b1": s * jax.random.normal(ks[11], (1, 1), jnp.float32),
    }


if __name__ == "__main__":
    token_emb_size = 32
    feature_size = 16
    output_size = 32
    width_buckets = 30
    max_span_width = 8
    top_span_ratio = 0.4
    num_words = 16
    num_spans = 8

    key = jax.random.PRNGKey(0)
    k_param, k_emb, k_start, k_width = jax.random.split(key, 4)

    params = init_params(k_param, token_emb_size, feature_size,
                         output_size, width_buckets)

    embs = jax.random.normal(k_emb, (1, num_words, token_emb_size), jnp.float32)
    starts = jax.random.randint(k_start, (num_spans,), 0, num_words, jnp.int32)
    widths = jax.random.randint(k_width, (num_spans,), 0, max_span_width, jnp.int32)
    ends = jnp.minimum(starts + widths, num_words - 1)

    # correctness: compare all-span scores / embeddings against the f32 reference
    ref_embs, ref_scores = reference_forward(params, starts, ends, embs)
    gold_embs, gold_scores, _ = span_scorer_forward(
        params, starts, ends, embs, use_gold_spans=True,
        top_span_ratio=top_span_ratio)
    jax.block_until_ready(gold_scores)
    assert gold_scores.shape == (num_spans,)
    assert bool(jnp.all(jnp.isfinite(gold_scores)))
    assert bool(jnp.allclose(gold_scores, ref_scores, rtol=1e-1, atol=1e-1))
    assert bool(jnp.allclose(gold_embs, ref_embs, rtol=1e-1, atol=1e-1))

    # top-k path
    top_span_embs, top_scores, top_k_indices = span_scorer_forward(
        params, starts, ends, embs, use_gold_spans=False,
        top_span_ratio=top_span_ratio)
    jax.block_until_ready((top_span_embs, top_scores, top_k_indices))

    k = int(num_words * top_span_ratio)
    assert top_span_embs.shape == (k, 3 * token_emb_size + feature_size)
    assert top_scores.shape == (k,)
    assert top_k_indices.shape == (k,)
    assert bool(jnp.all(jnp.isfinite(top_scores)))
    print("KERNEL_OK")
</pallas_src>

<mosaic_0001>
module attributes {stable_mosaic.version = 11 : i64} {
  func.func @_fused_span_kernel(%arg0: i32, %arg1: memref<128x1xi32, #tpu.memory_space<vmem>>, %arg2: memref<128x1xi32, #tpu.memory_space<vmem>>, %arg3: memref<128x32xbf16, #tpu.memory_space<vmem>>, %arg4: memref<1x32xbf16, #tpu.memory_space<vmem>>, %arg5: memref<1x1xf32, #tpu.memory_space<smem>>, %arg6: memref<128x64xbf16, #tpu.memory_space<vmem>>, %arg7: memref<128x32xbf16, #tpu.memory_space<vmem>>, %arg8: memref<64x32xbf16, #tpu.memory_space<vmem>>, %arg9: memref<32x32xbf16, #tpu.memory_space<vmem>>, %arg10: memref<1x32xf32, #tpu.memory_space<vmem>>, %arg11: memref<1x32xf32, #tpu.memory_space<vmem>>, %arg12: memref<1x128xf32, #tpu.memory_space<vmem>>, %arg13: memref<1x128xf32, #tpu.memory_space<vmem>>, %arg14: memref<128x32xbf16, #tpu.memory_space<vmem>>) attributes {dimension_semantics = [#tpu.dimension_semantics<parallel>], iteration_bounds = array<i64: 1>, scalar_prefetch = 0 : i64, scratch_operands = 0 : i64, tpu.core_type = #tpu.core_type<tc>, window_params = [{transform_indices = @transform_0, window_bounds = array<i64: 128, 1>}, {transform_indices = @transform_1, window_bounds = array<i64: 128, 1>}, {pipeline_mode = #tpu.pipeline_mode<synchronous>, transform_indices = @transform_2, window_bounds = array<i64: 128, 32>}, {pipeline_mode = #tpu.pipeline_mode<synchronous>, transform_indices = @transform_3, window_bounds = array<i64: 1, 32>}, {transform_indices = @transform_4, window_bounds = array<i64: 1, 1>}, {transform_indices = @transform_5, window_bounds = array<i64: 128, 64>}, {transform_indices = @transform_6, window_bounds = array<i64: 128, 32>}, {pipeline_mode = #tpu.pipeline_mode<synchronous>, transform_indices = @transform_7, window_bounds = array<i64: 64, 32>}, {pipeline_mode = #tpu.pipeline_mode<synchronous>, transform_indices = @transform_8, window_bounds = array<i64: 32, 32>}, {pipeline_mode = #tpu.pipeline_mode<synchronous>, transform_indices = @transform_9, window_bounds = array<i64: 1, 32>}, {pipeline_mode = #tpu.pipeline_mode<synchronous>, transform_indices = @transform_10, window_bounds = array<i64: 1, 32>}, {transform_indices = @transform_11, window_bounds = array<i64: 1, 128>}, {transform_indices = @transform_12, window_bounds = array<i64: 1, 128>}, {transform_indices = @transform_13, window_bounds = array<i64: 128, 32>}]} {
    %c0 = arith.constant 0 : index
    %c0_0 = arith.constant 0 : index
    %0 = vector.load %arg4[%c0, %c0_0] : memref<1x32xbf16, #tpu.memory_space<vmem>>, vector<1x32xbf16>
    %c0_1 = arith.constant 0 : index
    %c0_2 = arith.constant 0 : index
    %1 = vector.load %arg3[%c0_1, %c0_2] : memref<128x32xbf16, #tpu.memory_space<vmem>>, vector<128x32xbf16>
    %cst = arith.constant dense<0.000000e+00> : vector<1x128xf32>
    %2 = tpu.matmul %0, %1, %cst {dimension_numbers = #tpu.dot_dimension_numbers<[1], [1], [0], [0], [0, 0, 1, 0], [], []>} : vector<1x32xbf16>, vector<128x32xbf16>, vector<1x128xf32> -> vector<1x128xf32>
    %c0_3 = arith.constant 0 : index
    %c0_4 = arith.constant 0 : index
    %3 = memref.load %arg5[%c0_3, %c0_4] : memref<1x1xf32, #tpu.memory_space<smem>>
    %4 = vector.broadcast %3 : f32 to vector<1x128xf32>
    %5 = arith.addf %2, %4 : vector<1x128xf32>
    %c0_5 = arith.constant 0 : index
    %c0_6 = arith.constant 0 : index
    %6 = vector.load %arg1[%c0_5, %c0_6] : memref<128x1xi32, #tpu.memory_space<vmem>>, vector<128x1xi32>
    %c0_7 = arith.constant 0 : index
    %c0_8 = arith.constant 0 : index
    %7 = vector.load %arg2[%c0_7, %c0_8] : memref<128x1xi32, #tpu.memory_space<vmem>>, vector<128x1xi32>
    %8 = tpu.iota {dimensions = array<i32: 1>} : vector<128x128xi32>
    %9 = vector.broadcast %6 : vector<128x1xi32> to vector<128x128xi32>
    %10 = arith.cmpi sge, %8, %9 : vector<128x128xi32>
    %11 = vector.broadcast %7 : vector<128x1xi32> to vector<128x128xi32>
    %12 = arith.cmpi sle, %8, %11 : vector<128x128xi32>
    %13 = arith.andi %10, %12 : vector<128x128xi1>
    %cst_9 = arith.constant -1.000000e+30 : f32
    %14 = vector.shape_cast %5 : vector<1x128xf32> to vector<1x128xf32>
    %15 = vector.broadcast %14 : vector<1x128xf32> to vector<128x128xf32>
    %16 = vector.broadcast %cst_9 : f32 to vector<128x128xf32>
    %17 = arith.select %13, %15, %16 : vector<128x128xi1>, vector<128x128xf32>
    %cst_10 = arith.constant dense<0xFF800000> : vector<128xf32>
    %18 = vector.multi_reduction <maximumf>, %17, %cst_10 [1] : vector<128x128xf32> to vector<128xf32>
    %19 = vector.shape_cast %18 : vector<128xf32> to vector<128x1xf32>
    %20 = vector.broadcast %19 : vector<128x1xf32> to vector<128x128xf32>
    %21 = arith.subf %17, %20 : vector<128x128xf32>
    %22 = math.exp %21 : vector<128x128xf32>
    %cst_11 = arith.constant dense<0.000000e+00> : vector<128xf32>
    %23 = vector.multi_reduction <add>, %22, %cst_11 [1] : vector<128x128xf32> to vector<128xf32>
    %24 = vector.shape_cast %23 : vector<128xf32> to vector<128x1xf32>
    %25 = arith.truncf %22 : vector<128x128xf32> to vector<128x128xbf16>
    %c0_12 = arith.constant 0 : index
    %c0_13 = arith.constant 0 : index
    %26 = vector.load %arg3[%c0_12, %c0_13] : memref<128x32xbf16, #tpu.memory_space<vmem>>, vector<128x32xbf16>
    %cst_14 = arith.constant dense<0.000000e+00> : vector<128x32xf32>
    %27 = tpu.matmul %25, %26, %cst_14 {dimension_numbers = #tpu.dot_dimension_numbers<[1], [0], [0], [1], [0, 0, 1, 1], [], []>} : vector<128x128xbf16>, vector<128x32xbf16>, vector<128x32xf32> -> vector<128x32xf32>
    %28 = tpu.reciprocal %24 {approx = true} : vector<128x1xf32> -> vector<128x1xf32>
    %29 = vector.broadcast %28 : vector<128x1xf32> to vector<128x32xf32>
    %30 = arith.mulf %27, %29 : vector<128x32xf32>
    %31 = arith.truncf %30 : vector<128x32xf32> to vector<128x32xbf16>
    %c0_15 = arith.constant 0 : index
    %c0_16 = arith.constant 0 : index
    %32 = vector.load %arg14[%c0_15, %c0_16] : memref<128x32xbf16, #tpu.memory_space<vmem>>, vector<128x32xbf16>
    tpu.vector_store %arg14[%c0_15, %c0_16], %31 {strides = array<i32>} : memref<128x32xbf16, #tpu.memory_space<vmem>>, vector<128x32xbf16>,
    %c0_17 = arith.constant 0 : index
    %c0_18 = arith.constant 0 : index
    %33 = vector.load %arg6[%c0_17, %c0_18] : memref<128x64xbf16, #tpu.memory_space<vmem>>, vector<128x64xbf16>
    %c0_19 = arith.constant 0 : index
    %c0_20 = arith.constant 0 : index
    %34 = vector.load %arg8[%c0_19, %c0_20] : memref<64x32xbf16, #tpu.memory_space<vmem>>, vector<64x32xbf16>
    %cst_21 = arith.constant dense<0.000000e+00> : vector<128x32xf32>
    %35 = tpu.matmul %33, %34, %cst_21 {dimension_numbers = #tpu.dot_dimension_numbers<[1], [0], [0], [1], [0, 0, 1, 1], [], []>} : vector<128x64xbf16>, vector<64x32xbf16>, vector<128x32xf32> -> vector<128x32xf32>
    %c0_22 = arith.constant 0 : index
    %c0_23 = arith.constant 0 : index
    %36 = vector.load %arg9[%c0_22, %c0_23] : memref<32x32xbf16, #tpu.memory_space<vmem>>, vector<32x32xbf16>
    %cst_24 = arith.constant dense<0.000000e+00> : vector<128x32xf32>
    %37 = tpu.matmul %31, %36, %cst_24 {dimension_numbers = #tpu.dot_dimension_numbers<[1], [0], [0], [1], [0, 0, 1, 1], [], []>} : vector<128x32xbf16>, vector<32x32xbf16>, vector<128x32xf32> -> vector<128x32xf32>
    %38 = arith.addf %35, %37 : vector<128x32xf32>
    %c0_25 = arith.constant 0 : index
    %c0_26 = arith.constant 0 : index
    %39 = vector.load %arg7[%c0_25, %c0_26] : memref<128x32xbf16, #tpu.memory_space<vmem>>, vector<128x32xbf16>
    %40 = arith.extf %39 : vector<128x32xbf16> to vector<128x32xf32>
    %41 = arith.addf %38, %40 : vector<128x32xf32>
    %c0_27 = arith.constant 0 : index
    %c0_28 = arith.constant 0 : index
    %42 = vector.load %arg10[%c0_27, %c0_28] : memref<1x32xf32, #tpu.memory_space<vmem>>, vector<1x32xf32>
    %43 = vector.broadcast %42 : vector<1x32xf32> to vector<128x32xf32>
    %44 = arith.addf %41, %43 : vector<128x32xf32>
    %cst_29 = arith.constant 0.000000e+00 : f32
    %45 = vector.broadcast %cst_29 : f32 to vector<128x32xf32>
    %46 = arith.maximumf %44, %45 : vector<128x32xf32>
    %c0_30 = arith.constant 0 : index
    %c0_31 = arith.constant 0 : index
    %47 = vector.load %arg11[%c0_30, %c0_31] : memref<1x32xf32, #tpu.memory_space<vmem>>, vector<1x32xf32>
    %cst_32 = arith.constant dense<0.000000e+00> : vector<1x128xf32>
    %48 = tpu.matmul %47, %46, %cst_32 {dimension_numbers = #tpu.dot_dimension_numbers<[1], [1], [0], [0], [0, 0, 1, 0], [], []>} : vector<1x32xf32>, vector<128x32xf32>, vector<1x128xf32> -> vector<1x128xf32>
    %c0_33 = arith.constant 0 : index
    %c0_34 = arith.constant 0 : index
    %49 = vector.load %arg12[%c0_33, %c0_34] : memref<1x128xf32, #tpu.memory_space<vmem>>, vector<1x128xf32>
    %50 = arith.addf %48, %49 : vector<1x128xf32>
    %c0_35 = arith.constant 0 : index
    %c0_36 = arith.constant 0 : index
    %51 = vector.load %arg13[%c0_35, %c0_36] : memref<1x128xf32, #tpu.memory_space<vmem>>, vector<1x128xf32>
    tpu.vector_store %arg13[%c0_35, %c0_36], %50 {strides = array<i32>} : memref<1x128xf32, #tpu.memory_space<vmem>>, vector<1x128xf32>,
    return
  }
  func.func @transform_0(%arg0: i32) -> (i32, i32) {
    %c0_i32 = arith.constant 0 : i32
    %c0_i32_0 = arith.constant 0 : i32
    return %arg0, %c0_i32 : i32, i32
  }
  func.func @transform_1(%arg0: i32) -> (i32, i32) {
    %c0_i32 = arith.constant 0 : i32
    %c0_i32_0 = arith.constant 0 : i32
    return %arg0, %c0_i32 : i32, i32
  }
  func.func @transform_2(%arg0: i32) -> (i32, i32) {
    %c0_i32 = arith.constant 0 : i32
    %c0_i32_0 = arith.constant 0 : i32
    %c0_i32_1 = arith.constant 0 : i32
    return %c0_i32, %c0_i32_0 : i32, i32
  }
  func.func @transform_3(%arg0: i32) -> (i32, i32) {
    %c0_i32 = arith.constant 0 : i32
    %c0_i32_0 = arith.constant 0 : i32
    %c0_i32_1 = arith.constant 0 : i32
    return %c0_i32, %c0_i32_0 : i32, i32
  }
  func.func @transform_4(%arg0: i32) -> (i32, i32) {
    %c0_i32 = arith.constant 0 : i32
    %c0_i32_0 = arith.constant 0 : i32
    %c0_i32_1 = arith.constant 0 : i32
    return %c0_i32, %c0_i32_0 : i32, i32
  }
  func.func @transform_5(%arg0: i32) -> (i32, i32) {
    %c0_i32 = arith.constant 0 : i32
    %c0_i32_0 = arith.constant 0 : i32
    return %arg0, %c0_i32 : i32, i32
  }
  func.func @transform_6(%arg0: i32) -> (i32, i32) {
    %c0_i32 = arith.constant 0 : i32
    %c0_i32_0 = arith.constant 0 : i32
    return %arg0, %c0_i32 : i32, i32
  }
  func.func @transform_7(%arg0: i32) -> (i32, i32) {
    %c0_i32 = arith.constant 0 : i32
    %c0_i32_0 = arith.constant 0 : i32
    %c0_i32_1 = arith.constant 0 : i32
    return %c0_i32, %c0_i32_0 : i32, i32
  }
  func.func @transform_8(%arg0: i32) -> (i32, i32) {
    %c0_i32 = arith.constant 0 : i32
    %c0_i32_0 = arith.constant 0 : i32
    %c0_i32_1 = arith.constant 0 : i32
    return %c0_i32, %c0_i32_0 : i32, i32
  }
  func.func @transform_9(%arg0: i32) -> (i32, i32) {
    %c0_i32 = arith.constant 0 : i32
    %c0_i32_0 = arith.constant 0 : i32
    %c0_i32_1 = arith.constant 0 : i32
    return %c0_i32, %c0_i32_0 : i32, i32
  }
  func.func @transform_10(%arg0: i32) -> (i32, i32) {
    %c0_i32 = arith.constant 0 : i32
    %c0_i32_0 = arith.constant 0 : i32
    %c0_i32_1 = arith.constant 0 : i32
    return %c0_i32, %c0_i32_0 : i32, i32
  }
  func.func @transform_11(%arg0: i32) -> (i32, i32) {
    %c0_i32 = arith.constant 0 : i32
    %c0_i32_0 = arith.constant 0 : i32
    return %c0_i32, %arg0 : i32, i32
  }
  func.func @transform_12(%arg0: i32) -> (i32, i32) {
    %c0_i32 = arith.constant 0 : i32
    %c0_i32_0 = arith.constant 0 : i32
    return %c0_i32, %arg0 : i32, i32
  }
  func.func @transform_13(%arg0: i32) -> (i32, i32) {
    %c0_i32 = arith.constant 0 : i32
    %c0_i32_0 = arith.constant 0 : i32
    return %arg0, %c0_i32 : i32, i32
  }
}

module attributes {stable_mosaic.version = 11 : i64} {
  func.func @_fused_span_kernel(%arg0: i32, %arg1: memref<128x1xi32, #tpu.memory_space<vmem>>, %arg2: memref<128x1xi32, #tpu.memory_space<vmem>>, %arg3: memref<128x32xbf16, #tpu.memory_space<vmem>>, %arg4: memref<1x32xbf16, #tpu.memory_space<vmem>>, %arg5: memref<1x1xf32, #tpu.memory_space<smem>>, %arg6: memref<128x64xbf16, #tpu.memory_space<vmem>>, %arg7: memref<128x32xbf16, #tpu.memory_space<vmem>>, %arg8: memref<64x32xbf16, #tpu.memory_space<vmem>>, %arg9: memref<32x32xbf16, #tpu.memory_space<vmem>>, %arg10: memref<1x32xf32, #tpu.memory_space<vmem>>, %arg11: memref<1x32xf32, #tpu.memory_space<vmem>>, %arg12: memref<1x128xf32, #tpu.memory_space<vmem>>, %arg13: memref<1x128xf32, #tpu.memory_space<vmem>>, %arg14: memref<128x32xbf16, #tpu.memory_space<vmem>>) attributes {dimension_semantics = [#tpu.dimension_semantics<parallel>], iteration_bounds = array<i64: 1>, scalar_prefetch = 0 : i64, scratch_operands = 0 : i64, tpu.core_type = #tpu.core_type<tc>, window_params = [{transform_indices = @transform_0, window_bounds = array<i64: 128, 1>}, {transform_indices = @transform_1, window_bounds = array<i64: 128, 1>}, {pipeline_mode = #tpu.pipeline_mode<synchronous>, transform_indices = @transform_2, window_bounds = array<i64: 128, 32>}, {pipeline_mode = #tpu.pipeline_mode<synchronous>, transform_indices = @transform_3, window_bounds = array<i64: 1, 32>}, {transform_indices = @transform_4, window_bounds = array<i64: 1, 1>}, {transform_indices = @transform_5, window_bounds = array<i64: 128, 64>}, {transform_indices = @transform_6, window_bounds = array<i64: 128, 32>}, {pipeline_mode = #tpu.pipeline_mode<synchronous>, transform_indices = @transform_7, window_bounds = array<i64: 64, 32>}, {pipeline_mode = #tpu.pipeline_mode<synchronous>, transform_indices = @transform_8, window_bounds = array<i64: 32, 32>}, {pipeline_mode = #tpu.pipeline_mode<synchronous>, transform_indices = @transform_9, window_bounds = array<i64: 1, 32>}, {pipeline_mode = #tpu.pipeline_mode<synchronous>, transform_indices = @transform_10, window_bounds = array<i64: 1, 32>}, {transform_indices = @transform_11, window_bounds = array<i64: 1, 128>}, {transform_indices = @transform_12, window_bounds = array<i64: 1, 128>}, {transform_indices = @transform_13, window_bounds = array<i64: 128, 32>}]} {
    %c0 = arith.constant 0 : index
    %c0_0 = arith.constant 0 : index
    %0 = vector.load %arg4[%c0, %c0_0] : memref<1x32xbf16, #tpu.memory_space<vmem>>, vector<1x32xbf16>
    %c0_1 = arith.constant 0 : index
    %c0_2 = arith.constant 0 : index
    %1 = vector.load %arg3[%c0_1, %c0_2] : memref<128x32xbf16, #tpu.memory_space<vmem>>, vector<128x32xbf16>
    %cst = arith.constant dense<0.000000e+00> : vector<1x128xf32>
    %2 = tpu.matmul %0, %1, %cst {dimension_numbers = #tpu.dot_dimension_numbers<[1], [1], [0], [0], [0, 0, 1, 0], [], []>} : vector<1x32xbf16>, vector<128x32xbf16>, vector<1x128xf32> -> vector<1x128xf32>
    %c0_3 = arith.constant 0 : index
    %c0_4 = arith.constant 0 : index
    %3 = memref.load %arg5[%c0_3, %c0_4] : memref<1x1xf32, #tpu.memory_space<smem>>
    %4 = vector.broadcast %3 : f32 to vector<1x128xf32>
    %5 = arith.addf %2, %4 : vector<1x128xf32>
    %c0_5 = arith.constant 0 : index
    %c0_6 = arith.constant 0 : index
    %6 = vector.load %arg1[%c0_5, %c0_6] : memref<128x1xi32, #tpu.memory_space<vmem>>, vector<128x1xi32>
    %c0_7 = arith.constant 0 : index
    %c0_8 = arith.constant 0 : index
    %7 = vector.load %arg2[%c0_7, %c0_8] : memref<128x1xi32, #tpu.memory_space<vmem>>, vector<128x1xi32>
    %8 = tpu.iota {dimensions = array<i32: 1>} : vector<128x128xi32>
    %9 = vector.broadcast %6 : vector<128x1xi32> to vector<128x128xi32>
    %10 = arith.cmpi sge, %8, %9 : vector<128x128xi32>
    %11 = vector.broadcast %7 : vector<128x1xi32> to vector<128x128xi32>
    %12 = arith.cmpi sle, %8, %11 : vector<128x128xi32>
    %13 = arith.andi %10, %12 : vector<128x128xi1>
    %cst_9 = arith.constant -1.000000e+30 : f32
    %14 = vector.shape_cast %5 : vector<1x128xf32> to vector<1x128xf32>
    %15 = vector.broadcast %14 : vector<1x128xf32> to vector<128x128xf32>
    %16 = vector.broadcast %cst_9 : f32 to vector<128x128xf32>
    %17 = arith.select %13, %15, %16 : vector<128x128xi1>, vector<128x128xf32>
    %cst_10 = arith.constant dense<0xFF800000> : vector<128xf32>
    %18 = vector.multi_reduction <maximumf>, %17, %cst_10 [1] : vector<128x128xf32> to vector<128xf32>
    %19 = vector.shape_cast %18 : vector<128xf32> to vector<128x1xf32>
    %20 = vector.broadcast %19 : vector<128x1xf32> to vector<128x128xf32>
    %21 = arith.subf %17, %20 : vector<128x128xf32>
    %22 = math.exp %21 : vector<128x128xf32>
    %cst_11 = arith.constant dense<0.000000e+00> : vector<128xf32>
    %23 = vector.multi_reduction <add>, %22, %cst_11 [1] : vector<128x128xf32> to vector<128xf32>
    %24 = vector.shape_cast %23 : vector<128xf32> to vector<128x1xf32>
    %25 = arith.truncf %22 : vector<128x128xf32> to vector<128x128xbf16>
    %c0_12 = arith.constant 0 : index
    %c0_13 = arith.constant 0 : index
    %26 = vector.load %arg3[%c0_12, %c0_13] : memref<128x32xbf16, #tpu.memory_space<vmem>>, vector<128x32xbf16>
    %cst_14 = arith.constant dense<0.000000e+00> : vector<128x32xf32>
    %27 = tpu.matmul %25, %26, %cst_14 {dimension_numbers = #tpu.dot_dimension_numbers<[1], [0], [0], [1], [0, 0, 1, 1], [], []>} : vector<128x128xbf16>, vector<128x32xbf16>, vector<128x32xf32> -> vector<128x32xf32>
    %28 = tpu.reciprocal %24 {approx = true} : vector<128x1xf32> -> vector<128x1xf32>
    %29 = vector.broadcast %28 : vector<128x1xf32> to vector<128x32xf32>
    %30 = arith.mulf %27, %29 : vector<128x32xf32>
    %31 = arith.truncf %30 : vector<128x32xf32> to vector<128x32xbf16>
    %c0_15 = arith.constant 0 : index
    %c0_16 = arith.constant 0 : index
    %32 = vector.load %arg14[%c0_15, %c0_16] : memref<128x32xbf16, #tpu.memory_space<vmem>>, vector<128x32xbf16>
    tpu.vector_store %arg14[%c0_15, %c0_16], %31 {strides = array<i32>} : memref<128x32xbf16, #tpu.memory_space<vmem>>, vector<128x32xbf16>,
    %c0_17 = arith.constant 0 : index
    %c0_18 = arith.constant 0 : index
    %33 = vector.load %arg6[%c0_17, %c0_18] : memref<128x64xbf16, #tpu.memory_space<vmem>>, vector<128x64xbf16>
    %c0_19 = arith.constant 0 : index
    %c0_20 = arith.constant 0 : index
    %34 = vector.load %arg8[%c0_19, %c0_20] : memref<64x32xbf16, #tpu.memory_space<vmem>>, vector<64x32xbf16>
    %cst_21 = arith.constant dense<0.000000e+00> : vector<128x32xf32>
    %35 = tpu.matmul %33, %34, %cst_21 {dimension_numbers = #tpu.dot_dimension_numbers<[1], [0], [0], [1], [0, 0, 1, 1], [], []>} : vector<128x64xbf16>, vector<64x32xbf16>, vector<128x32xf32> -> vector<128x32xf32>
    %c0_22 = arith.constant 0 : index
    %c0_23 = arith.constant 0 : index
    %36 = vector.load %arg9[%c0_22, %c0_23] : memref<32x32xbf16, #tpu.memory_space<vmem>>, vector<32x32xbf16>
    %cst_24 = arith.constant dense<0.000000e+00> : vector<128x32xf32>
    %37 = tpu.matmul %31, %36, %cst_24 {dimension_numbers = #tpu.dot_dimension_numbers<[1], [0], [0], [1], [0, 0, 1, 1], [], []>} : vector<128x32xbf16>, vector<32x32xbf16>, vector<128x32xf32> -> vector<128x32xf32>
    %38 = arith.addf %35, %37 : vector<128x32xf32>
    %c0_25 = arith.constant 0 : index
    %c0_26 = arith.constant 0 : index
    %39 = vector.load %arg7[%c0_25, %c0_26] : memref<128x32xbf16, #tpu.memory_space<vmem>>, vector<128x32xbf16>
    %40 = arith.extf %39 : vector<128x32xbf16> to vector<128x32xf32>
    %41 = arith.addf %38, %40 : vector<128x32xf32>
    %c0_27 = arith.constant 0 : index
    %c0_28 = arith.constant 0 : index
    %42 = vector.load %arg10[%c0_27, %c0_28] : memref<1x32xf32, #tpu.memory_space<vmem>>, vector<1x32xf32>
    %43 = vector.broadcast %42 : vector<1x32xf32> to vector<128x32xf32>
    %44 = arith.addf %41, %43 : vector<128x32xf32>
    %cst_29 = arith.constant 0.000000e+00 : f32
    %45 = vector.broadcast %cst_29 : f32 to vector<128x32xf32>
    %46 = arith.maximumf %44, %45 : vector<128x32xf32>
    %c0_30 = arith.constant 0 : index
    %c0_31 = arith.constant 0 : index
    %47 = vector.load %arg11[%c0_30, %c0_31] : memref<1x32xf32, #tpu.memory_space<vmem>>, vector<1x32xf32>
    %cst_32 = arith.constant dense<0.000000e+00> : vector<1x128xf32>
    %48 = tpu.matmul %47, %46, %cst_32 {dimension_numbers = #tpu.dot_dimension_numbers<[1], [1], [0], [0], [0, 0, 1, 0], [], []>} : vector<1x32xf32>, vector<128x32xf32>, vector<1x128xf32> -> vector<1x128xf32>
    %c0_33 = arith.constant 0 : index
    %c0_34 = arith.constant 0 : index
    %49 = vector.load %arg12[%c0_33, %c0_34] : memref<1x128xf32, #tpu.memory_space<vmem>>, vector<1x128xf32>
    %50 = arith.addf %48, %49 : vector<1x128xf32>
    %c0_35 = arith.constant 0 : index
    %c0_36 = arith.constant 0 : index
    %51 = vector.load %arg13[%c0_35, %c0_36] : memref<1x128xf32, #tpu.memory_space<vmem>>, vector<1x128xf32>
    tpu.vector_store %arg13[%c0_35, %c0_36], %50 {strides = array<i32>} : memref<1x128xf32, #tpu.memory_space<vmem>>, vector<1x128xf32>,
    return
  }
  func.func @transform_0(%arg0: i32) -> (i32, i32) {
    %c0_i32 = arith.constant 0 : i32
    %c0_i32_0 = arith.constant 0 : i32
    return %arg0, %c0_i32 : i32, i32
  }
  func.func @transform_1(%arg0: i32) -> (i32, i32) {
    %c0_i32 = arith.constant 0 : i32
    %c0_i32_0 = arith.constant 0 : i32
    return %arg0, %c0_i32 : i32, i32
  }
  func.func @transform_2(%arg0: i32) -> (i32, i32) {
    %c0_i32 = arith.constant 0 : i32
    %c0_i32_0 = arith.constant 0 : i32
    %c0_i32_1 = arith.constant 0 : i32
    return %c0_i32, %c0_i32_0 : i32, i32
  }
  func.func @transform_3(%arg0: i32) -> (i32, i32) {
    %c0_i32 = arith.constant 0 : i32
    %c0_i32_0 = arith.constant 0 : i32
    %c0_i32_1 = arith.constant 0 : i32
    return %c0_i32, %c0_i32_0 : i32, i32
  }
  func.func @transform_4(%arg0: i32) -> (i32, i32) {
    %c0_i32 = arith.constant 0 : i32
    %c0_i32_0 = arith.constant 0 : i32
    %c0_i32_1 = arith.constant 0 : i32
    return %c0_i32, %c0_i32_0 : i32, i32
  }
  func.func @transform_5(%arg0: i32) -> (i32, i32) {
    %c0_i32 = arith.constant 0 : i32
    %c0_i32_0 = arith.constant 0 : i32
    return %arg0, %c0_i32 : i32, i32
  }
  func.func @transform_6(%arg0: i32) -> (i32, i32) {
    %c0_i32 = arith.constant 0 : i32
    %c0_i32_0 = arith.constant 0 : i32
    return %arg0, %c0_i32 : i32, i32
  }
  func.func @transform_7(%arg0: i32) -> (i32, i32) {
    %c0_i32 = arith.constant 0 : i32
    %c0_i32_0 = arith.constant 0 : i32
    %c0_i32_1 = arith.constant 0 : i32
    return %c0_i32, %c0_i32_0 : i32, i32
  }
  func.func @transform_8(%arg0: i32) -> (i32, i32) {
    %c0_i32 = arith.constant 0 : i32
    %c0_i32_0 = arith.constant 0 : i32
    %c0_i32_1 = arith.constant 0 : i32
    return %c0_i32, %c0_i32_0 : i32, i32
  }
  func.func @transform_9(%arg0: i32) -> (i32, i32) {
    %c0_i32 = arith.constant 0 : i32
    %c0_i32_0 = arith.constant 0 : i32
    %c0_i32_1 = arith.constant 0 : i32
    return %c0_i32, %c0_i32_0 : i32, i32
  }
  func.func @transform_10(%arg0: i32) -> (i32, i32) {
    %c0_i32 = arith.constant 0 : i32
    %c0_i32_0 = arith.constant 0 : i32
    %c0_i32_1 = arith.constant 0 : i32
    return %c0_i32, %c0_i32_0 : i32, i32
  }
  func.func @transform_11(%arg0: i32) -> (i32, i32) {
    %c0_i32 = arith.constant 0 : i32
    %c0_i32_0 = arith.constant 0 : i32
    return %c0_i32, %arg0 : i32, i32
  }
  func.func @transform_12(%arg0: i32) -> (i32, i32) {
    %c0_i32 = arith.constant 0 : i32
    %c0_i32_0 = arith.constant 0 : i32
    return %c0_i32, %arg0 : i32, i32
  }
  func.func @transform_13(%arg0: i32) -> (i32, i32) {
    %c0_i32 = arith.constant 0 : i32
    %c0_i32_0 = arith.constant 0 : i32
    return %arg0, %c0_i32 : i32, i32
  }
}

</mosaic_0001>

<llo_original>
// kernel: tpu_custom_call.1
$region0: #{tpu_custom_call.1}
  #allocation0 [shape = 'u32[]', space=smem, size = 0x4, offset = 0x4, fixed_abs, tag = 'smem constant byte address 0x4 - core index']
  #allocation1 [shape = 'u32[144,128]{1,0:T(1,128)}', space=vmem, size = 0x12000, scoped, tag = 'internal scratch']
  #allocation2 [shape = 'f32[1,1]{1,0:T(1,128)S(6)}', space=smem, size = 0x200, scoped, tag = 'scoped memory for tpu_custom_call.1']
  %s0 = inlined_call_operand.vmem [shape: s32[128,1], index: 0, kind: input, shape index: {}]
  %s1 = inlined_call_operand.vmem [shape: s32[128,1], index: 1, kind: input, shape index: {}]
  %s2 = inlined_call_operand.vmem [shape: bf16[128,32], index: 2, kind: input, shape index: {}]
  %s3 = inlined_call_operand.vmem [shape: bf16[1,32], index: 3, kind: input, shape index: {}]
  %s4 = inlined_call_operand.<no memory space> [shape: f32[1,1], index: 4, kind: input, shape index: {}]
  %s5 = inlined_call_operand.vmem [shape: bf16[128,64], index: 5, kind: input, shape index: {}]
  %s6 = inlined_call_operand.vmem [shape: bf16[128,32], index: 6, kind: input, shape index: {}]
  %s7 = inlined_call_operand.vmem [shape: bf16[64,32], index: 7, kind: input, shape index: {}]
  %s8 = inlined_call_operand.vmem [shape: bf16[32,32], index: 8, kind: input, shape index: {}]
  %s9 = inlined_call_operand.vmem [shape: f32[1,32], index: 9, kind: input, shape index: {}]
  %s10 = inlined_call_operand.vmem [shape: f32[1,32], index: 10, kind: input, shape index: {}]
  %s11 = inlined_call_operand.vmem [shape: f32[1,128], index: 11, kind: input, shape index: {}]
  %s12 = inlined_call_operand.hbm [shape: f32[1,128], index: 12, kind: output, shape index: {0}]
  %s13 = inlined_call_operand.vmem [shape: bf16[128,32], index: 13, kind: output, shape index: {1}]
  %14 = xla_tuple %s12, %s13
  %s15 = sld [smem:[#allocation0]]
  $region66: #{tpu_custom_call.1} parent=0
    _
  %s17 = ssub.s32 1, %s15
  %s18 = scalar_select 0, %s17, %s15
  %19 = sst [smem:[#allocation2]] %s4
  $region1: #{tpu_custom_call.1} parent=0
    #allocation3 [shape = 'u8[512]{0}', space=vmem, size = 0x400, scoped, tag = 'output window, operand 0, single buffered']
    #allocation4 [shape = 's32[1]{0}', space=sflag, size = 0x4, scoped, tag = 'scoped memory for tpu_custom_call.1']
    %20 = vsyncpa [#allocation4], 0
    // Predicated region
    $region2: #{tpu_custom_call.1} parent=1 // pred_check
      _
    $region3: #{tpu_custom_call.1} parent=1 // pred_check_branch
      %22 = sbr.rel (0) target = $region5
    $region4: #{tpu_custom_call.1} parent=1 // pred_region
      _
    $region5: #{tpu_custom_call.1} parent=1 // pred_fallthru
      _
    // Predicated region
    $region6: #{tpu_custom_call.1} parent=1 // pred_check
      _
    $region7: #{tpu_custom_call.1} parent=1 // pred_check_branch
      %24 = sbr.rel (0) target = $region9
    $region8: #{tpu_custom_call.1} parent=1 // pred_region
      _
    $region9: #{tpu_custom_call.1} parent=1 // pred_fallthru
      _
    // Predicated region
    $region10: #{tpu_custom_call.1} parent=1 // pred_check
      _
    $region11: #{tpu_custom_call.1} parent=1 // pred_check_branch
      %26 = sbr.rel (0) target = $region13
    $region12: #{tpu_custom_call.1} parent=1 // pred_region
      _
    $region13: #{tpu_custom_call.1} parent=1 // pred_fallthru
      _
    // Predicated region
    $region14: #{tpu_custom_call.1} parent=1 // pred_check
      _
    $region15: #{tpu_custom_call.1} parent=1 // pred_check_branch
      %28 = sbr.rel (0) target = $region17
    $region16: #{tpu_custom_call.1} parent=1 // pred_region
      _
    $region17: #{tpu_custom_call.1} parent=1 // pred_fallthru
      _
    // Predicated region
    $region18: #{tpu_custom_call.1} parent=1 // pred_check
      _
    $region19: #{tpu_custom_call.1} parent=1 // pred_check_branch
      %30 = sbr.rel (0) target = $region21
    $region20: #{tpu_custom_call.1} parent=1 // pred_region
      _
    $region21: #{tpu_custom_call.1} parent=1 // pred_fallthru
      _
    // Predicated region
    $region22: #{tpu_custom_call.1} parent=1 // pred_check
      _
    $region23: #{tpu_custom_call.1} parent=1 // pred_check_branch
      %32 = sbr.rel (0) target = $region25
    $region24: #{tpu_custom_call.1} parent=1 // pred_region
      _
    $region25: #{tpu_custom_call.1} parent=1 // pred_fallthru
      _
    // Predicated region
    $region26: #{tpu_custom_call.1} parent=1 // pred_check
      _
    $region27: #{tpu_custom_call.1} parent=1 // pred_check_branch
      %34 = sbr.rel (0) target = $region29
    $region28: #{tpu_custom_call.1} parent=1 // pred_region
      _
    $region29: #{tpu_custom_call.1} parent=1 // pred_fallthru
      _
    // Predicated region
    $region30: #{tpu_custom_call.1} parent=1 // pred_check
      _
    $region31: #{tpu_custom_call.1} parent=1 // pred_check_branch
      %36 = sbr.rel (0) target = $region33
    $region32: #{tpu_custom_call.1} parent=1 // pred_region
      _
    $region33: #{tpu_custom_call.1} parent=1 // pred_fallthru
      _
    // Predicated region
    $region34: #{tpu_custom_call.1} parent=1 // pred_check
      _
    $region35: #{tpu_custom_call.1} parent=1 // pred_check_branch
      %38 = sbr.rel (0) target = $region37
    $region36: #{tpu_custom_call.1} parent=1 // pred_region
      _
    $region37: #{tpu_custom_call.1} parent=1 // pred_fallthru
      _
    // Predicated region
    $region38: #{tpu_custom_call.1} parent=1 // pred_check
      _
    $region39: #{tpu_custom_call.1} parent=1 // pred_check_branch
      %40 = sbr.rel (0) target = $region41
    $region40: #{tpu_custom_call.1} parent=1 // pred_region
      _
    $region41: #{tpu_custom_call.1} parent=1 // pred_fallthru
      _
    // Predicated region
    $region42: #{tpu_custom_call.1} parent=1 // pred_check
      _
    $region43: #{tpu_custom_call.1} parent=1 // pred_check_branch
      %42 = sbr.rel (0) target = $region45
    $region44: #{tpu_custom_call.1} parent=1 // pred_region
      _
    $region45: #{tpu_custom_call.1} parent=1 // pred_fallthru
      _
    // Predicated region
    $region46: #{tpu_custom_call.1} parent=1 // pred_check
      _
    $region47: #{tpu_custom_call.1} parent=1 // pred_check_branch
      %44 = sbr.rel (0) target = $region49
    $region48: #{tpu_custom_call.1} parent=1 // pred_region
      _
    $region49: #{tpu_custom_call.1} parent=1 // pred_fallthru
      _
    %v46 = vld [vmem:[%s3] sm:$0x1]
    %v47 = vld [vmem:[%s2] sm:$0xf]
    %v48 = vld [vmem:[%s2 + $0x4] sm:$0xf]
    %v49 = vld [vmem:[%s2 + $0x8] sm:$0xf]
    %v50 = vld [vmem:[%s2 + $0xc] sm:$0xf]
    %v51 = vld [vmem:[%s2 + $0x10] sm:$0xf]
    %v52 = vld [vmem:[%s2 + $0x14] sm:$0xf]
    %v53 = vld [vmem:[%s2 + $0x18] sm:$0xf]
    %v54 = vld [vmem:[%s2 + $0x1c] sm:$0xf]
    %v55 = vld [vmem:[%s2 + $0x20] sm:$0xf]
    %v56 = vld [vmem:[%s2 + $0x24] sm:$0xf]
    %v57 = vld [vmem:[%s2 + $0x28] sm:$0xf]
    %v58 = vld [vmem:[%s2 + $0x2c] sm:$0xf]
    %v59 = vld [vmem:[%s2 + $0x30] sm:$0xf]
    %v60 = vld [vmem:[%s2 + $0x34] sm:$0xf]
    %v61 = vld [vmem:[%s2 + $0x38] sm:$0xf]
    %v62 = vld [vmem:[%s2 + $0x3c] sm:$0xf]
    %s63 = sld [smem:[#allocation2]]
    %v64 = vstv %s63
    %v81 = vunpack.c.l.b16 %v47
    %v82 = vunpack.c.l.b16 %v48
    %v83 = vunpack.c.l.b16 %v49
    %v84 = vunpack.c.l.b16 %v50
    %v85 = vunpack.c.l.b16 %v51
    %v86 = vunpack.c.l.b16 %v52
    %v87 = vunpack.c.l.b16 %v53
    %v88 = vunpack.c.l.b16 %v54
    %v89 = vunpack.c.l.b16 %v55
    %v90 = vunpack.c.l.b16 %v56
    %v91 = vunpack.c.l.b16 %v57
    %v92 = vunpack.c.l.b16 %v58
    %v93 = vunpack.c.l.b16 %v59
    %v94 = vunpack.c.l.b16 %v60
    %v95 = vunpack.c.l.b16 %v61
    %v96 = vunpack.c.l.b16 %v62
    %v97 = vpack.c.b16 %v82, %v81
    %v98 = vpack.c.b16 %v84, %v83
    %v99 = vpack.c.b16 %v86, %v85
    %v100 = vpack.c.b16 %v88, %v87
    %v101 = vpack.c.b16 %v90, %v89
    %v102 = vpack.c.b16 %v92, %v91
    %v103 = vpack.c.b16 %v94, %v93
    %v104 = vpack.c.b16 %v96, %v95
    %vm105 = vcmask 261120
    %v107 = vsel %vm105, %v46, 0
    %v110 = vsel %vm105, %v97, 0
    %v113 = vsel %vm105, %v98, 0
    %v116 = vsel %vm105, %v99, 0
    %v119 = vsel %vm105, %v100, 0
    %v122 = vsel %vm105, %v101, 0
    %v125 = vsel %vm105, %v102, 0
    %v128 = vsel %vm105, %v103, 0
    %v131 = vsel %vm105, %v104, 0
    %133 = vmatprep.subr.bf16.mxu0 0
    %134 = vmatpush1.bf16.xpose.msra.mxu0 %v131
    %135 = vmatprep.subr.bf16.mxu0 0
    %136 = vmatpush1.bf16.xpose.msra.mxu0 %v128
    %137 = vmatprep.subr.bf16.mxu0 0
    %138 = vmatpush1.bf16.xpose.msra.mxu0 %v125
    %139 = vmatprep.subr.bf16.mxu0 0
    %140 = vmatpush1.bf16.xpose.msra.mxu0 %v122
    %141 = vmatprep.subr.bf16.mxu0 0
    %142 = vmatpush1.bf16.xpose.msra.mxu0 %v119
    %143 = vmatprep.subr.bf16.mxu0 0
    %144 = vmatpush1.bf16.xpose.msra.mxu0 %v116
    %145 = vmatprep.subr.bf16.mxu0 0
    %146 = vmatpush1.bf16.xpose.msra.mxu0 %v113
    %147 = vmatprep.subr.bf16.mxu0 0
    %148 = vmatpush1.bf16.xpose.msra.mxu0 %v110
    %149 = vmatprep.subr.bf16.mxu0 0
    %150 = vmatpush2.bf16.xpose.msra.mxu0 0
    %151 = vmatprep.subr.bf16.mxu0 0
    %152 = vmatpush2.bf16.xpose.msra.mxu0 0
    %153 = vmatprep.subr.bf16.mxu0 0
    %154 = vmatpush2.bf16.xpose.msra.mxu0 0
    %155 = vmatprep.subr.bf16.mxu0 0
    %156 = vmatpush2.bf16.xpose.msra.mxu0 0
    %157 = vmatprep.subr.bf16.mxu0 0
    %158 = vmatpush2.bf16.xpose.msra.mxu0 0
    %159 = vmatprep.subr.bf16.mxu0 0
    %160 = vmatpush2.bf16.xpose.msra.mxu0 0
    %161 = vmatprep.subr.bf16.mxu0 0
    %162 = vmatpush2.bf16.xpose.msra.mxu0 0
    %163 = vmatprep.subr.bf16.mxu0 0
    %164 = vmatpush2.bf16.xpose.msra.mxu0 0
    %165 = vmatprep.mubr.bf16.mxu0 0
    %166 = vmatmul.mubr.bf16.gmra.mxu0 %v107
    %v167 = vpop.f32.mrf.mxu0
    %v168 = vadd.f32 %v64, %v167
    %v169 = vpop.f32.mrf.mxu0
    %v170 = vpop.f32.mrf.mxu0
    %v171 = vpop.f32.mrf.mxu0
    %172 = vdwg.mxu0
    %v173 = vld [vmem:[%s0] sm:$0xff]
    %v174 = vld [vmem:[%s0 + $0x8] sm:$0xff]
    %v175 = vld [vmem:[%s0 + $0x10] sm:$0xff]
    %v176 = vld [vmem:[%s0 + $0x18] sm:$0xff]
    %v177 = vld [vmem:[%s0 + $0x20] sm:$0xff]
    %v178 = vld [vmem:[%s0 + $0x28] sm:$0xff]
    %v179 = vld [vmem:[%s0 + $0x30] sm:$0xff]
    %v180 = vld [vmem:[%s0 + $0x38] sm:$0xff]
    %v181 = vld [vmem:[%s0 + $0x40] sm:$0xff]
    %v182 = vld [vmem:[%s0 + $0x48] sm:$0xff]
    %v183 = vld [vmem:[%s0 + $0x50] sm:$0xff]
    %v184 = vld [vmem:[%s0 + $0x58] sm:$0xff]
    %v185 = vld [vmem:[%s0 + $0x60] sm:$0xff]
    %v186 = vld [vmem:[%s0 + $0x68] sm:$0xff]
    %v187 = vld [vmem:[%s0 + $0x70] sm:$0xff]
    %v188 = vld [vmem:[%s0 + $0x78] sm:$0xff]
    %v189 = vld [vmem:[%s1] sm:$0xff]
    %v190 = vld [vmem:[%s1 + $0x8] sm:$0xff]
    %v191 = vld [vmem:[%s1 + $0x10] sm:$0xff]
    %v192 = vld [vmem:[%s1 + $0x18] sm:$0xff]
    %v193 = vld [vmem:[%s1 + $0x20] sm:$0xff]
    %v194 = vld [vmem:[%s1 + $0x28] sm:$0xff]
    %v195 = vld [vmem:[%s1 + $0x30] sm:$0xff]
    %v196 = vld [vmem:[%s1 + $0x38] sm:$0xff]
    %v197 = vld [vmem:[%s1 + $0x40] sm:$0xff]
    %v198 = vld [vmem:[%s1 + $0x48] sm:$0xff]
    %v199 = vld [vmem:[%s1 + $0x50] sm:$0xff]
    %v200 = vld [vmem:[%s1 + $0x58] sm:$0xff]
    %v201 = vld [vmem:[%s1 + $0x60] sm:$0xff]
    %v202 = vld [vmem:[%s1 + $0x68] sm:$0xff]
    %v203 = vld [vmem:[%s1 + $0x70] sm:$0xff]
    %v204 = vld [vmem:[%s1 + $0x78] sm:$0xff]
    %v205 = vlaneseq
    %v206 = vand.u32 %v205, 127
    %207 = vset.pattern.permute.xlu0 0
    %208 = vperm.xlu0 %207, %v173
    %v209 = vpop.permute.xlu0 %208
    %210 = vset.pattern.permute.xlu0 0
    %211 = vperm.xlu0 %210, %v174
    %v212 = vpop.permute.xlu0 %211
    %213 = vset.pattern.permute.xlu0 0
    %214 = vperm.xlu0 %213, %v175
    %v215 = vpop.permute.xlu0 %214
    %216 = vset.pattern.permute.xlu0 0
    %217 = vperm.xlu0 %216, %v176
    %v218 = vpop.permute.xlu0 %217
    %219 = vset.pattern.permute.xlu0 0
    %220 = vperm.xlu0 %219, %v177
    %v221 = vpop.permute.xlu0 %220
    %222 = vset.pattern.permute.xlu0 0
    %223 = vperm.xlu0 %222, %v178
    %v224 = vpop.permute.xlu0 %223
    %225 = vset.pattern.permute.xlu0 0
    %226 = vperm.xlu0 %225, %v179
    %v227 = vpop.permute.xlu0 %226
    %228 = vset.pattern.permute.xlu0 0
    %229 = vperm.xlu0 %228, %v180
    %v230 = vpop.permute.xlu0 %229
    %231 = vset.pattern.permute.xlu0 0
    %232 = vperm.xlu0 %231, %v181
    %v233 = vpop.permute.xlu0 %232
    %234 = vset.pattern.permute.xlu0 0
    %235 = vperm.xlu0 %234, %v182
    %v236 = vpop.permute.xlu0 %235
    %237 = vset.pattern.permute.xlu0 0
    %238 = vperm.xlu0 %237, %v183
    %v239 = vpop.permute.xlu0 %238
    %240 = vset.pattern.permute.xlu0 0
    %241 = vperm.xlu0 %240, %v184
    %v242 = vpop.permute.xlu0 %241
    %243 = vset.pattern.permute.xlu0 0
    %244 = vperm.xlu0 %243, %v185
    %v245 = vpop.permute.xlu0 %244
    %246 = vset.pattern.permute.xlu0 0
    %247 = vperm.xlu0 %246, %v186
    %v248 = vpop.permute.xlu0 %247
    %249 = vset.pattern.permute.xlu0 0
    %250 = vperm.xlu0 %249, %v187
    %v251 = vpop.permute.xlu0 %250
    %252 = vset.pattern.permute.xlu0 0
    %253 = vperm.xlu0 %252, %v188
    %v254 = vpop.permute.xlu0 %253
    %vm255 = vcmp.ge.s32.totalorder %v206, %v209
    %vm256 = vcmp.ge.s32.totalorder %v206, %v212
    %vm257 = vcmp.ge.s32.totalorder %v206, %v215
    %vm258 = vcmp.ge.s32.totalorder %v206, %v218
    %vm259 = vcmp.ge.s32.totalorder %v206, %v221
    %vm260 = vcmp.ge.s32.totalorder %v206, %v224
    %vm261 = vcmp.ge.s32.totalorder %v206, %v227
    %vm262 = vcmp.ge.s32.totalorder %v206, %v230
    %vm263 = vcmp.ge.s32.totalorder %v206, %v233
    %vm264 = vcmp.ge.s32.totalorder %v206, %v236
    %vm265 = vcmp.ge.s32.totalorder %v206, %v239
    %vm266 = vcmp.ge.s32.totalorder %v206, %v242
    %vm267 = vcmp.ge.s32.totalorder %v206, %v245
    %vm268 = vcmp.ge.s32.totalorder %v206, %v248
    %vm269 = vcmp.ge.s32.totalorder %v206, %v251
    %vm270 = vcmp.ge.s32.totalorder %v206, %v254
    %271 = vset.pattern.permute.xlu0 0
    %272 = vperm.xlu0 %271, %v189
    %v273 = vpop.permute.xlu0 %272
    %274 = vset.pattern.permute.xlu0 0
    %275 = vperm.xlu0 %274, %v190
    %v276 = vpop.permute.xlu0 %275
    %277 = vset.pattern.permute.xlu0 0
    %278 = vperm.xlu0 %277, %v191
    %v279 = vpop.permute.xlu0 %278
    %280 = vset.pattern.permute.xlu0 0
    %281 = vperm.xlu0 %280, %v192
    %v282 = vpop.permute.xlu0 %281
    %283 = vset.pattern.permute.xlu0 0
    %284 = vperm.xlu0 %283, %v193
    %v285 = vpop.permute.xlu0 %284
    %286 = vset.pattern.permute.xlu0 0
    %287 = vperm.xlu0 %286, %v194
    %v288 = vpop.permute.xlu0 %287
    %289 = vset.pattern.permute.xlu0 0
    %290 = vperm.xlu0 %289, %v195
    %v291 = vpop.permute.xlu0 %290
    %292 = vset.pattern.permute.xlu0 0
    %293 = vperm.xlu0 %292, %v196
    %v294 = vpop.permute.xlu0 %293
    %295 = vset.pattern.permute.xlu0 0
    %296 = vperm.xlu0 %295, %v197
    %v297 = vpop.permute.xlu0 %296
    %298 = vset.pattern.permute.xlu0 0
    %299 = vperm.xlu0 %298, %v198
    %v300 = vpop.permute.xlu0 %299
    %301 = vset.pattern.permute.xlu0 0
    %302 = vperm.xlu0 %301, %v199
    %v303 = vpop.permute.xlu0 %302
    %304 = vset.pattern.permute.xlu0 0
    %305 = vperm.xlu0 %304, %v200
    %v306 = vpop.permute.xlu0 %305
    %307 = vset.pattern.permute.xlu0 0
    %308 = vperm.xlu0 %307, %v201
    %v309 = vpop.permute.xlu0 %308
    %310 = vset.pattern.permute.xlu0 0
    %311 = vperm.xlu0 %310, %v202
    %v312 = vpop.permute.xlu0 %311
    %313 = vset.pattern.permute.xlu0 0
    %314 = vperm.xlu0 %313, %v203
    %v315 = vpop.permute.xlu0 %314
    %316 = vset.pattern.permute.xlu0 0
    %317 = vperm.xlu0 %316, %v204
    %v318 = vpop.permute.xlu0 %317
    %vm319 = vcmp.le.s32.totalorder %v206, %v273
    %vm320 = vcmp.le.s32.totalorder %v206, %v276
    %vm321 = vcmp.le.s32.totalorder %v206, %v279
    %vm322 = vcmp.le.s32.totalorder %v206, %v282
    %vm323 = vcmp.le.s32.totalorder %v206, %v285
    %vm324 = vcmp.le.s32.totalorder %v206, %v288
    %vm325 = vcmp.le.s32.totalorder %v206, %v291
    %vm326 = vcmp.le.s32.totalorder %v206, %v294
    %vm327 = vcmp.le.s32.totalorder %v206, %v297
    %vm328 = vcmp.le.s32.totalorder %v206, %v300
    %vm329 = vcmp.le.s32.totalorder %v206, %v303
    %vm330 = vcmp.le.s32.totalorder %v206, %v306
    %vm331 = vcmp.le.s32.totalorder %v206, %v309
    %vm332 = vcmp.le.s32.totalorder %v206, %v312
    %vm333 = vcmp.le.s32.totalorder %v206, %v315
    %vm334 = vcmp.le.s32.totalorder %v206, %v318
    %vm335 = vmand %vm255, %vm319
    %vm336 = vmand %vm256, %vm320
    %vm337 = vmand %vm257, %vm321
    %vm338 = vmand %vm258, %vm322
    %vm339 = vmand %vm259, %vm323
    %vm340 = vmand %vm260, %vm324
    %vm341 = vmand %vm261, %vm325
    %vm342 = vmand %vm262, %vm326
    %vm343 = vmand %vm263, %vm327
    %vm344 = vmand %vm264, %vm328
    %vm345 = vmand %vm265, %vm329
    %vm346 = vmand %vm266, %vm330
    %vm347 = vmand %vm267, %vm331
    %vm348 = vmand %vm268, %vm332
    %vm349 = vmand %vm269, %vm333
    %vm350 = vmand %vm270, %vm334
    %v351 = vlaneseq
    %v352 = vshrl.u32 %v351, 7
    %v353 = vsub.s32 0, %v352
    %v354 = vrot.slane %v168, %v353
    %v355 = vsel %vm335, %v354, -1e+30
    %v356 = vsel %vm336, %v354, -1e+30
    %v357 = vsel %vm337, %v354, -1e+30
    %v358 = vsel %vm338, %v354, -1e+30
    %v359 = vsel %vm339, %v354, -1e+30
    %v360 = vsel %vm340, %v354, -1e+30
    %v361 = vsel %vm341, %v354, -1e+30
    %v362 = vsel %vm342, %v354, -1e+30
    %v363 = vsel %vm343, %v354, -1e+30
    %v364 = vsel %vm344, %v354, -1e+30
    %v365 = vsel %vm345, %v354, -1e+30
    %v366 = vsel %vm346, %v354, -1e+30
    %v367 = vsel %vm347, %v354, -1e+30
    %v368 = vsel %vm348, %v354, -1e+30
    %v369 = vsel %vm349, %v354, -1e+30
    %v370 = vsel %vm350, %v354, -1e+30
    %371 = vmax.xlane.f32.xlu0 %v355
    %v372 = vpop.xlane.xlu0 %371
    %373 = vmax.xlane.f32.xlu0 %v356
    %v374 = vpop.xlane.xlu0 %373
    %375 = vmax.xlane.f32.xlu0 %v357
    %v376 = vpop.xlane.xlu0 %375
    %377 = vmax.xlane.f32.xlu0 %v358
    %v378 = vpop.xlane.xlu0 %377
    %379 = vmax.xlane.f32.xlu0 %v359
    %v380 = vpop.xlane.xlu0 %379
    %381 = vmax.xlane.f32.xlu0 %v360
    %v382 = vpop.xlane.xlu0 %381
    %383 = vmax.xlane.f32.xlu0 %v361
    %v384 = vpop.xlane.xlu0 %383
    %385 = vmax.xlane.f32.xlu0 %v362
    %v386 = vpop.xlane.xlu0 %385
    %387 = vmax.xlane.f32.xlu0 %v363
    %v388 = vpop.xlane.xlu0 %387
    %389 = vmax.xlane.f32.xlu0 %v364
    %v390 = vpop.xlane.xlu0 %389
    %391 = vmax.xlane.f32.xlu0 %v365
    %v392 = vpop.xlane.xlu0 %391
    %393 = vmax.xlane.f32.xlu0 %v366
    %v394 = vpop.xlane.xlu0 %393
    %395 = vmax.xlane.f32.xlu0 %v367
    %v396 = vpop.xlane.xlu0 %395
    %397 = vmax.xlane.f32.xlu0 %v368
    %v398 = vpop.xlane.xlu0 %397
    %399 = vmax.xlane.f32.xlu0 %v369
    %v400 = vpop.xlane.xlu0 %399
    %401 = vmax.xlane.f32.xlu0 %v370
    %v402 = vpop.xlane.xlu0 %401
    %v403 = vsub.f32 %v355, %v372
    %v404 = vsub.f32 %v356, %v374
    %v405 = vsub.f32 %v357, %v376
    %v406 = vsub.f32 %v358, %v378
    %v407 = vsub.f32 %v359, %v380
    %v408 = vsub.f32 %v360, %v382
    %v409 = vsub.f32 %v361, %v384
    %v410 = vsub.f32 %v362, %v386
    %v411 = vsub.f32 %v363, %v388
    %v412 = vsub.f32 %v364, %v390
    %v413 = vsub.f32 %v365, %v392
    %v414 = vsub.f32 %v366, %v394
    %v415 = vsub.f32 %v367, %v396
    %v416 = vsub.f32 %v368, %v398
    %v417 = vsub.f32 %v369, %v400
    %v418 = vsub.f32 %v370, %v402
    %v419 = vmul.f32 %v403, 1.442695
    %v420 = vpow.pop %v419
    %v421 = vmul.f32 %v404, 1.442695
    %v422 = vpow.pop %v421
    %v423 = vmul.f32 %v405, 1.442695
    %v424 = vpow.pop %v423
    %v425 = vmul.f32 %v406, 1.442695
    %v426 = vpow.pop %v425
    %v427 = vmul.f32 %v407, 1.442695
    %v428 = vpow.pop %v427
    %v429 = vmul.f32 %v408, 1.442695
    %v430 = vpow.pop %v429
    %v431 = vmul.f32 %v409, 1.442695
    %v432 = vpow.pop %v431
    %v433 = vmul.f32 %v410, 1.442695
    %v434 = vpow.pop %v433
    %v435 = vmul.f32 %v411, 1.442695
    %v436 = vpow.pop %v435
    %v437 = vmul.f32 %v412, 1.442695
    %v438 = vpow.pop %v437
    %v439 = vmul.f32 %v413, 1.442695
    %v440 = vpow.pop %v439
    %v441 = vmul.f32 %v414, 1.442695
    %v442 = vpow.pop %v441
    %v443 = vmul.f32 %v415, 1.442695
    %v444 = vpow.pop %v443
    %v445 = vmul.f32 %v416, 1.442695
    %v446 = vpow.pop %v445
    %v447 = vmul.f32 %v417, 1.442695
    %v448 = vpow.pop %v447
    %v449 = vmul.f32 %v418, 1.442695
    %v450 = vpow.pop %v449
    %451 = vadd.xlane.f32.xlu0 %v420
    %v452 = vpop.xlane.xlu0 %451
    %453 = vadd.xlane.f32.xlu0 %v422
    %v454 = vpop.xlane.xlu0 %453
    %455 = vadd.xlane.f32.xlu0 %v424
    %v456 = vpop.xlane.xlu0 %455
    %457 = vadd.xlane.f32.xlu0 %v426
    %v458 = vpop.xlane.xlu0 %457
    %459 = vadd.xlane.f32.xlu0 %v428
    %v460 = vpop.xlane.xlu0 %459
    %461 = vadd.xlane.f32.xlu0 %v430
    %v462 = vpop.xlane.xlu0 %461
    %463 = vadd.xlane.f32.xlu0 %v432
    %v464 = vpop.xlane.xlu0 %463
    %465 = vadd.xlane.f32.xlu0 %v434
    %v466 = vpop.xlane.xlu0 %465
    %467 = vadd.xlane.f32.xlu0 %v436
    %v468 = vpop.xlane.xlu0 %467
    %469 = vadd.xlane.f32.xlu0 %v438
    %v470 = vpop.xlane.xlu0 %469
    %471 = vadd.xlane.f32.xlu0 %v440
    %v472 = vpop.xlane.xlu0 %471
    %473 = vadd.xlane.f32.xlu0 %v442
    %v474 = vpop.xlane.xlu0 %473
    %475 = vadd.xlane.f32.xlu0 %v444
    %v476 = vpop.xlane.xlu0 %475
    %477 = vadd.xlane.f32.xlu0 %v446
    %v478 = vpop.xlane.xlu0 %477
    %479 = vadd.xlane.f32.xlu0 %v448
    %v480 = vpop.xlane.xlu0 %479
    %481 = vadd.xlane.f32.xlu0 %v450
    %v482 = vpop.xlane.xlu0 %481
    %v483 = vpack.c.bf16 %v422, %v420
    %v484 = vpack.c.bf16 %v426, %v424
    %v485 = vpack.c.bf16 %v430, %v428
    %v486 = vpack.c.bf16 %v434, %v432
    %v487 = vpack.c.bf16 %v438, %v436
    %v488 = vpack.c.bf16 %v442, %v440
    %v489 = vpack.c.bf16 %v446, %v444
    %v490 = vpack.c.bf16 %v450, %v448
    %499 = vmatprep.subr.bf16.mxu0 0
    %500 = vmatpush1.bf16.msra.mxu0 %v104
    %501 = vmatprep.subr.bf16.mxu0 0
    %502 = vmatpush1.bf16.msra.mxu0 %v103
    %503 = vmatprep.subr.bf16.mxu0 0
    %504 = vmatpush1.bf16.msra.mxu0 %v102
    %505 = vmatprep.subr.bf16.mxu0 0
    %506 = vmatpush1.bf16.msra.mxu0 %v101
    %507 = vmatprep.subr.bf16.mxu0 0
    %508 = vmatpush1.bf16.msra.mxu0 %v100
    %509 = vmatprep.subr.bf16.mxu0 0
    %510 = vmatpush1.bf16.msra.mxu0 %v99
    %511 = vmatprep.subr.bf16.mxu0 0
    %512 = vmatpush1.bf16.msra.mxu0 %v98
    %513 = vmatprep.subr.bf16.mxu0 0
    %514 = vmatpush1.bf16.msra.mxu0 %v97
    %515 = vmatprep.subr.bf16.mxu0 0
    %516 = vmatpush2.bf16.msra.mxu0 0
    %517 = vmatprep.subr.bf16.mxu0 0
    %518 = vmatpush2.bf16.msra.mxu0 0
    %519 = vmatprep.subr.bf16.mxu0 0
    %520 = vmatpush2.bf16.msra.mxu0 0
    %521 = vmatprep.subr.bf16.mxu0 0
    %522 = vmatpush2.bf16.msra.mxu0 0
    %523 = vmatprep.subr.bf16.mxu0 0
    %524 = vmatpush2.bf16.msra.mxu0 0
    %525 = vmatprep.subr.bf16.mxu0 0
    %526 = vmatpush2.bf16.msra.mxu0 0
    %527 = vmatprep.subr.bf16.mxu0 0
    %528 = vmatpush2.bf16.msra.mxu0 0
    %529 = vmatprep.subr.bf16.mxu0 0
    %530 = vmatpush2.bf16.msra.mxu0 0
    %531 = vmatprep.mubr.bf16.mxu0 0
    %532 = vmatmul.mubr.bf16.gmra.mxu0 %v483
    %v533 = vpop.f32.mrf.mxu0
    %v534 = vadd.f32 0.0, %v533
    %v535 = vpop.f32.mrf.mxu0
    %v536 = vpop.f32.mrf.mxu0
    %v537 = vadd.f32 0.0, %v536
    %v538 = vpop.f32.mrf.mxu0
    %539 = vmatprep.mubr.bf16.mxu0 0
    %540 = vmatmul.mubr.bf16.gmra.mxu0 %v484
    %v541 = vpop.f32.mrf.mxu0
    %v542 = vadd.f32 0.0, %v541
    %v543 = vpop.f32.mrf.mxu0
    %v544 = vpop.f32.mrf.mxu0
    %v545 = vadd.f32 0.0, %v544
    %v546 = vpop.f32.mrf.mxu0
    %547 = vmatprep.mubr.bf16.mxu0 0
    %548 = vmatmul.mubr.bf16.gmra.mxu0 %v485
    %v549 = vpop.f32.mrf.mxu0
    %v550 = vadd.f32 0.0, %v549
    %v551 = vpop.f32.mrf.mxu0
    %v552 = vpop.f32.mrf.mxu0
    %v553 = vadd.f32 0.0, %v552
    %v554 = vpop.f32.mrf.mxu0
    %555 = vmatprep.mubr.bf16.mxu0 0
    %556 = vmatmul.mubr.bf16.gmra.mxu0 %v486
    %v557 = vpop.f32.mrf.mxu0
    %v558 = vadd.f32 0.0, %v557
    %v559 = vpop.f32.mrf.mxu0
    %v560 = vpop.f32.mrf.mxu0
    %v561 = vadd.f32 0.0, %v560
    %v562 = vpop.f32.mrf.mxu0
    %563 = vmatprep.mubr.bf16.mxu0 0
    %564 = vmatmul.mubr.bf16.gmra.mxu0 %v487
    %v565 = vpop.f32.mrf.mxu0
    %v566 = vadd.f32 0.0, %v565
    %v567 = vpop.f32.mrf.mxu0
    %v568 = vpop.f32.mrf.mxu0
    %v569 = vadd.f32 0.0, %v568
    %v570 = vpop.f32.mrf.mxu0
    %571 = vmatprep.mubr.bf16.mxu0 0
    %572 = vmatmul.mubr.bf16.gmra.mxu0 %v488
    %v573 = vpop.f32.mrf.mxu0
    %v574 = vadd.f32 0.0, %v573
    %v575 = vpop.f32.mrf.mxu0
    %v576 = vpop.f32.mrf.mxu0
    %v577 = vadd.f32 0.0, %v576
    %v578 = vpop.f32.mrf.mxu0
    %579 = vmatprep.mubr.bf16.mxu0 0
    %580 = vmatmul.mubr.bf16.gmra.mxu0 %v489
    %v581 = vpop.f32.mrf.mxu0
    %v582 = vadd.f32 0.0, %v581
    %v583 = vpop.f32.mrf.mxu0
    %v584 = vpop.f32.mrf.mxu0
    %v585 = vadd.f32 0.0, %v584
    %v586 = vpop.f32.mrf.mxu0
    %587 = vmatprep.mubr.bf16.mxu0 0
    %588 = vmatmul.mubr.bf16.gmra.mxu0 %v490
    %v589 = vpop.f32.mrf.mxu0
    %v590 = vadd.f32 0.0, %v589
    %v591 = vpop.f32.mrf.mxu0
    %v592 = vpop.f32.mrf.mxu0
    %v593 = vadd.f32 0.0, %v592
    %v594 = vpop.f32.mrf.mxu0
    %595 = vdwg.mxu0
    %v596 = vrcp.pop %v452
    %v597 = vrcp.pop %v454
    %v598 = vrcp.pop %v456
    %v599 = vrcp.pop %v458
    %v600 = vrcp.pop %v460
    %v601 = vrcp.pop %v462
    %v602 = vrcp.pop %v464
    %v603 = vrcp.pop %v466
    %v604 = vrcp.pop %v468
    %v605 = vrcp.pop %v470
    %v606 = vrcp.pop %v472
    %v607 = vrcp.pop %v474
    %v608 = vrcp.pop %v476
    %v609 = vrcp.pop %v478
    %v610 = vrcp.pop %v480
    %v611 = vrcp.pop %v482
    %v612 = vmul.f32 %v534, %v596
    %v613 = vmul.f32 %v537, %v597
    %v614 = vmul.f32 %v542, %v598
    %v615 = vmul.f32 %v545, %v599
    %v616 = vmul.f32 %v550, %v600
    %v617 = vmul.f32 %v553, %v601
    %v618 = vmul.f32 %v558, %v602
    %v619 = vmul.f32 %v561, %v603
    %v620 = vmul.f32 %v566, %v604
    %v621 = vmul.f32 %v569, %v605
    %v622 = vmul.f32 %v574, %v606
    %v623 = vmul.f32 %v577, %v607
    %v624 = vmul.f32 %v582, %v608
    %v625 = vmul.f32 %v585, %v609
    %v626 = vmul.f32 %v590, %v610
    %v627 = vmul.f32 %v593, %v611
    %v628 = vpack.c.bf16 %v613, %v612
    %v629 = vpack.c.bf16 %v615, %v614
    %v630 = vpack.c.bf16 %v617, %v616
    %v631 = vpack.c.bf16 %v619, %v618
    %v632 = vpack.c.bf16 %v621, %v620
    %v633 = vpack.c.bf16 %v623, %v622
    %v634 = vpack.c.bf16 %v625, %v624
    %v635 = vpack.c.bf16 %v627, %v626
    %v644 = vunpack.c.l.b16 %v628
    %v645 = vunpack.c.h.b16 %v628
    %v646 = vunpack.c.l.b16 %v629
    %v647 = vunpack.c.h.b16 %v629
    %v648 = vunpack.c.l.b16 %v630
    %v649 = vunpack.c.h.b16 %v630
    %v650 = vunpack.c.l.b16 %v631
    %v651 = vunpack.c.h.b16 %v631
    %v652 = vunpack.c.l.b16 %v632
    %v653 = vunpack.c.h.b16 %v632
    %v654 = vunpack.c.l.b16 %v633
    %v655 = vunpack.c.h.b16 %v633
    %v656 = vunpack.c.l.b16 %v634
    %v657 = vunpack.c.h.b16 %v634
    %v658 = vunpack.c.l.b16 %v635
    %v659 = vunpack.c.h.b16 %v635
    %v660 = vpack.c.b16 %v644, %v644
    %v661 = vpack.c.b16 %v645, %v645
    %v662 = vpack.c.b16 %v646, %v646
    %v663 = vpack.c.b16 %v647, %v647
    %v664 = vpack.c.b16 %v648, %v648
    %v665 = vpack.c.b16 %v649, %v649
    %v666 = vpack.c.b16 %v650, %v650
    %v667 = vpack.c.b16 %v651, %v651
    %v668 = vpack.c.b16 %v652, %v652
    %v669 = vpack.c.b16 %v653, %v653
    %v670 = vpack.c.b16 %v654, %v654
    %v671 = vpack.c.b16 %v655, %v655
    %v672 = vpack.c.b16 %v656, %v656
    %v673 = vpack.c.b16 %v657, %v657
    %v674 = vpack.c.b16 %v658, %v658
    %v675 = vpack.c.b16 %v659, %v659
    %vm692 = vcmask 257024
    %693 = vst.msk [vmem:[%s13] sm:$0xf] %vm692, %v660
    %694 = vst.msk [vmem:[%s13 + $0x4] sm:$0xf] %vm692, %v661
    %695 = vst.msk [vmem:[%s13 + $0x8] sm:$0xf] %vm692, %v662
    %696 = vst.msk [vmem:[%s13 + $0xc] sm:$0xf] %vm692, %v663
    %697 = vst.msk [vmem:[%s13 + $0x10] sm:$0xf] %vm692, %v664
    %698 = vst.msk [vmem:[%s13 + $0x14] sm:$0xf] %vm692, %v665
    %699 = vst.msk [vmem:[%s13 + $0x18] sm:$0xf] %vm692, %v666
    %700 = vst.msk [vmem:[%s13 + $0x1c] sm:$0xf] %vm692, %v667
    %701 = vst.msk [vmem:[%s13 + $0x20] sm:$0xf] %vm692, %v668
    %702 = vst.msk [vmem:[%s13 + $0x24] sm:$0xf] %vm692, %v669
    %703 = vst.msk [vmem:[%s13 + $0x28] sm:$0xf] %vm692, %v670
    %704 = vst.msk [vmem:[%s13 + $0x2c] sm:$0xf] %vm692, %v671
    %705 = vst.msk [vmem:[%s13 + $0x30] sm:$0xf] %vm692, %v672
    %706 = vst.msk [vmem:[%s13 + $0x34] sm:$0xf] %vm692, %v673
    %707 = vst.msk [vmem:[%s13 + $0x38] sm:$0xf] %vm692, %v674
    %708 = vst.msk [vmem:[%s13 + $0x3c] sm:$0xf] %vm692, %v675
    %v709 = vld [vmem:[%s5] sm:$0xf]
    %v710 = vld [vmem:[%s5 + $0x4] sm:$0xf]
    %v711 = vld [vmem:[%s5 + $0x8] sm:$0xf]
    %v712 = vld [vmem:[%s5 + $0xc] sm:$0xf]
    %v713 = vld [vmem:[%s5 + $0x10] sm:$0xf]
    %v714 = vld [vmem:[%s5 + $0x14] sm:$0xf]
    %v715 = vld [vmem:[%s5 + $0x18] sm:$0xf]
    %v716 = vld [vmem:[%s5 + $0x1c] sm:$0xf]
    %v717 = vld [vmem:[%s5 + $0x20] sm:$0xf]
    %v718 = vld [vmem:[%s5 + $0x24] sm:$0xf]
    %v719 = vld [vmem:[%s5 + $0x28] sm:$0xf]
    %v720 = vld [vmem:[%s5 + $0x2c] sm:$0xf]
    %v721 = vld [vmem:[%s5 + $0x30] sm:$0xf]
    %v722 = vld [vmem:[%s5 + $0x34] sm:$0xf]
    %v723 = vld [vmem:[%s5 + $0x38] sm:$0xf]
    %v724 = vld [vmem:[%s5 + $0x3c] sm:$0xf]
    %v725 = vld [vmem:[%s7] sm:$0xf]
    %v726 = vld [vmem:[%s7 + $0x4] sm:$0xf]
    %v727 = vld [vmem:[%s7 + $0x8] sm:$0xf]
    %v728 = vld [vmem:[%s7 + $0xc] sm:$0xf]
    %v729 = vld [vmem:[%s7 + $0x10] sm:$0xf]
    %v730 = vld [vmem:[%s7 + $0x14] sm:$0xf]
    %v731 = vld [vmem:[%s7 + $0x18] sm:$0xf]
    %v732 = vld [vmem:[%s7 + $0x1c] sm:$0xf]
    %v733 = vld [vmem:[%s8] sm:$0xf]
    %v734 = vld [vmem:[%s8 + $0x4] sm:$0xf]
    %v735 = vld [vmem:[%s8 + $0x8] sm:$0xf]
    %v736 = vld [vmem:[%s8 + $0xc] sm:$0xf]
    %v741 = vunpack.c.l.b16 %v733
    %v742 = vunpack.c.l.b16 %v734
    %v743 = vunpack.c.l.b16 %v735
    %v744 = vunpack.c.l.b16 %v736
    %v745 = vpack.c.b16 %v742, %v741
    %v746 = vpack.c.b16 %v744, %v743
    %v750 = vsel %vm105, %v628, 0
    %v753 = vsel %vm105, %v629, 0
    %v756 = vsel %vm105, %v630, 0
    %v759 = vsel %vm105, %v631, 0
    %v762 = vsel %vm105, %v632, 0
    %v765 = vsel %vm105, %v633, 0
    %v768 = vsel %vm105, %v634, 0
    %v771 = vsel %vm105, %v635, 0
    %773 = vmatprep.subr.bf16.mxu0 0
    %774 = vmatpush1.bf16.msra.mxu0 0
    %775 = vmatprep.subr.bf16.mxu0 0
    %776 = vmatpush1.bf16.msra.mxu0 0
    %777 = vmatprep.subr.bf16.mxu0 0
    %778 = vmatpush1.bf16.msra.mxu0 0
    %779 = vmatprep.subr.bf16.mxu0 0
    %780 = vmatpush1.bf16.msra.mxu0 0
    %781 = vmatprep.subr.bf16.mxu0 0
    %782 = vmatpush1.bf16.msra.mxu0 0
    %783 = vmatprep.subr.bf16.mxu0 0
    %784 = vmatpush1.bf16.msra.mxu0 0
    %785 = vmatprep.subr.bf16.mxu0 0
    %786 = vmatpush1.bf16.msra.mxu0 %v746
    %787 = vmatprep.subr.bf16.mxu0 0
    %788 = vmatpush1.bf16.msra.mxu0 %v745
    %789 = vmatprep.subr.bf16.mxu0 0
    %790 = vmatpush2.bf16.msra.mxu0 0
    %791 = vmatprep.subr.bf16.mxu0 0
    %792 = vmatpush2.bf16.msra.mxu0 0
    %793 = vmatprep.subr.bf16.mxu0 0
    %794 = vmatpush2.bf16.msra.mxu0 0
    %795 = vmatprep.subr.bf16.mxu0 0
    %796 = vmatpush2.bf16.msra.mxu0 0
    %797 = vmatprep.subr.bf16.mxu0 0
    %798 = vmatpush2.bf16.msra.mxu0 0
    %799 = vmatprep.subr.bf16.mxu0 0
    %800 = vmatpush2.bf16.msra.mxu0 0
    %801 = vmatprep.subr.bf16.mxu0 0
    %802 = vmatpush2.bf16.msra.mxu0 0
    %803 = vmatprep.subr.bf16.mxu0 0
    %804 = vmatpush2.bf16.msra.mxu0 0
    %805 = vmatprep.mubr.bf16.mxu0 0
    %806 = vmatmul.mubr.bf16.gmra.mxu0 %v750
    %v807 = vpop.f32.mrf.mxu0
    %v808 = vadd.f32 0.0, %v807
    %v809 = vpop.f32.mrf.mxu0
    %v810 = vpop.f32.mrf.mxu0
    %v811 = vadd.f32 0.0, %v810
    %v812 = vpop.f32.mrf.mxu0
    %813 = vmatprep.mubr.bf16.mxu0 0
    %814 = vmatmul.mubr.bf16.gmra.mxu0 %v753
    %v815 = vpop.f32.mrf.mxu0
    %v816 = vadd.f32 0.0, %v815
    %v817 = vpop.f32.mrf.mxu0
    %v818 = vpop.f32.mrf.mxu0
    %v819 = vadd.f32 0.0, %v818
    %v820 = vpop.f32.mrf.mxu0
    %821 = vmatprep.mubr.bf16.mxu0 0
    %822 = vmatmul.mubr.bf16.gmra.mxu0 %v756
    %v823 = vpop.f32.mrf.mxu0
    %v824 = vadd.f32 0.0, %v823
    %v825 = vpop.f32.mrf.mxu0
    %v826 = vpop.f32.mrf.mxu0
    %v827 = vadd.f32 0.0, %v826
    %v828 = vpop.f32.mrf.mxu0
    %829 = vmatprep.mubr.bf16.mxu0 0
    %830 = vmatmul.mubr.bf16.gmra.mxu0 %v759
    %v831 = vpop.f32.mrf.mxu0
    %v832 = vadd.f32 0.0, %v831
    %v833 = vpop.f32.mrf.mxu0
    %v834 = vpop.f32.mrf.mxu0
    %v835 = vadd.f32 0.0, %v834
    %v836 = vpop.f32.mrf.mxu0
    %837 = vmatprep.mubr.bf16.mxu0 0
    %838 = vmatmul.mubr.bf16.gmra.mxu0 %v762
    %v839 = vpop.f32.mrf.mxu0
    %v840 = vadd.f32 0.0, %v839
    %v841 = vpop.f32.mrf.mxu0
    %v842 = vpop.f32.mrf.mxu0
    %v843 = vadd.f32 0.0, %v842
    %v844 = vpop.f32.mrf.mxu0
    %845 = vmatprep.mubr.bf16.mxu0 0
    %846 = vmatmul.mubr.bf16.gmra.mxu0 %v765
    %v847 = vpop.f32.mrf.mxu0
    %v848 = vadd.f32 0.0, %v847
    %v849 = vpop.f32.mrf.mxu0
    %v850 = vpop.f32.mrf.mxu0
    %v851 = vadd.f32 0.0, %v850
    %v852 = vpop.f32.mrf.mxu0
    %853 = vmatprep.mubr.bf16.mxu0 0
    %854 = vmatmul.mubr.bf16.gmra.mxu0 %v768
    %v855 = vpop.f32.mrf.mxu0
    %v856 = vadd.f32 0.0, %v855
    %v857 = vpop.f32.mrf.mxu0
    %v858 = vpop.f32.mrf.mxu0
    %v859 = vadd.f32 0.0, %v858
    %v860 = vpop.f32.mrf.mxu0
    %861 = vmatprep.mubr.bf16.mxu0 0
    %862 = vmatmul.mubr.bf16.gmra.mxu0 %v771
    %v863 = vpop.f32.mrf.mxu0
    %v864 = vadd.f32 0.0, %v863
    %v865 = vpop.f32.mrf.mxu0
    %v866 = vpop.f32.mrf.mxu0
    %v867 = vadd.f32 0.0, %v866
    %v868 = vpop.f32.mrf.mxu0
    %869 = vdwg.mxu0
    %v886 = vunpack.c.l.b16 %v709
    %v887 = vunpack.c.l.b16 %v710
    %v888 = vunpack.c.l.b16 %v711
    %v889 = vunpack.c.l.b16 %v712
    %v890 = vunpack.c.l.b16 %v713
    %v891 = vunpack.c.l.b16 %v714
    %v892 = vunpack.c.l.b16 %v715
    %v893 = vunpack.c.l.b16 %v716
    %v894 = vunpack.c.l.b16 %v717
    %v895 = vunpack.c.l.b16 %v718
    %v896 = vunpack.c.l.b16 %v719
    %v897 = vunpack.c.l.b16 %v720
    %v898 = vunpack.c.l.b16 %v721
    %v899 = vunpack.c.l.b16 %v722
    %v900 = vunpack.c.l.b16 %v723
    %v901 = vunpack.c.l.b16 %v724
    %v902 = vpack.c.b16 %v887, %v886
    %v903 = vpack.c.b16 %v889, %v888
    %v904 = vpack.c.b16 %v891, %v890
    %v905 = vpack.c.b16 %v893, %v892
    %v906 = vpack.c.b16 %v895, %v894
    %v907 = vpack.c.b16 %v897, %v896
    %v908 = vpack.c.b16 %v899, %v898
    %v909 = vpack.c.b16 %v901, %v900
    %v918 = vunpack.c.l.b16 %v725
    %v919 = vunpack.c.l.b16 %v726
    %v920 = vunpack.c.l.b16 %v727
    %v921 = vunpack.c.l.b16 %v728
    %v922 = vunpack.c.l.b16 %v729
    %v923 = vunpack.c.l.b16 %v730
    %v924 = vunpack.c.l.b16 %v731
    %v925 = vunpack.c.l.b16 %v732
    %v926 = vpack.c.b16 %v919, %v918
    %v927 = vpack.c.b16 %v921, %v920
    %v928 = vpack.c.b16 %v923, %v922
    %v929 = vpack.c.b16 %v925, %v924
    %vm934 = vcmask 523264
    %v936 = vsel %vm934, %v902, 0
    %v939 = vsel %vm934, %v903, 0
    %v942 = vsel %vm934, %v904, 0
    %v945 = vsel %vm934, %v905, 0
    %v948 = vsel %vm934, %v906, 0
    %v951 = vsel %vm934, %v907, 0
    %v954 = vsel %vm934, %v908, 0
    %v957 = vsel %vm934, %v909, 0
    %959 = vmatprep.subr.bf16.mxu0 0
    %960 = vmatpush1.bf16.msra.mxu0 0
    %961 = vmatprep.subr.bf16.mxu0 0
    %962 = vmatpush1.bf16.msra.mxu0 0
    %963 = vmatprep.subr.bf16.mxu0 0
    %964 = vmatpush1.bf16.msra.mxu0 0
    %965 = vmatprep.subr.bf16.mxu0 0
    %966 = vmatpush1.bf16.msra.mxu0 0
    %967 = vmatprep.subr.bf16.mxu0 0
    %968 = vmatpush1.bf16.msra.mxu0 %v929
    %969 = vmatprep.subr.bf16.mxu0 0
    %970 = vmatpush1.bf16.msra.mxu0 %v928
    %971 = vmatprep.subr.bf16.mxu0 0
    %972 = vmatpush1.bf16.msra.mxu0 %v927
    %973 = vmatprep.subr.bf16.mxu0 0
    %974 = vmatpush1.bf16.msra.mxu0 %v926
    %975 = vmatprep.subr.bf16.mxu0 0
    %976 = vmatpush2.bf16.msra.mxu0 0
    %977 = vmatprep.subr.bf16.mxu0 0
    %978 = vmatpush2.bf16.msra.mxu0 0
    %979 = vmatprep.subr.bf16.mxu0 0
    %980 = vmatpush2.bf16.msra.mxu0 0
    %981 = vmatprep.subr.bf16.mxu0 0
    %982 = vmatpush2.bf16.msra.mxu0 0
    %983 = vmatprep.subr.bf16.mxu0 0
    %984 = vmatpush2.bf16.msra.mxu0 0
    %985 = vmatprep.subr.bf16.mxu0 0
    %986 = vmatpush2.bf16.msra.mxu0 0
    %987 = vmatprep.subr.bf16.mxu0 0
    %988 = vmatpush2.bf16.msra.mxu0 0
    %989 = vmatprep.subr.bf16.mxu0 0
    %990 = vmatpush2.bf16.msra.mxu0 0
    %991 = vmatprep.mubr.bf16.mxu0 0
    %992 = vmatmul.mubr.bf16.gmra.mxu0 %v936
    %v993 = vpop.f32.mrf.mxu0
    %v994 = vadd.f32 %v808, %v993
    %v995 = vpop.f32.mrf.mxu0
    %v996 = vpop.f32.mrf.mxu0
    %v997 = vadd.f32 %v811, %v996
    %v998 = vpop.f32.mrf.mxu0
    %999 = vmatprep.mubr.bf16.mxu0 0
    %1000 = vmatmul.mubr.bf16.gmra.mxu0 %v939
    %v1001 = vpop.f32.mrf.mxu0
    %v1002 = vadd.f32 %v816, %v1001
    %v1003 = vpop.f32.mrf.mxu0
    %v1004 = vpop.f32.mrf.mxu0
    %v1005 = vadd.f32 %v819, %v1004
    %v1006 = vpop.f32.mrf.mxu0
    %1007 = vmatprep.mubr.bf16.mxu0 0
    %1008 = vmatmul.mubr.bf16.gmra.mxu0 %v942
    %v1009 = vpop.f32.mrf.mxu0
    %v1010 = vadd.f32 %v824, %v1009
    %v1011 = vpop.f32.mrf.mxu0
    %v1012 = vpop.f32.mrf.mxu0
    %v1013 = vadd.f32 %v827, %v1012
    %v1014 = vpop.f32.mrf.mxu0
    %1015 = vmatprep.mubr.bf16.mxu0 0
    %1016 = vmatmul.mubr.bf16.gmra.mxu0 %v945
    %v1017 = vpop.f32.mrf.mxu0
    %v1018 = vadd.f32 %v832, %v1017
    %v1019 = vpop.f32.mrf.mxu0
    %v1020 = vpop.f32.mrf.mxu0
    %v1021 = vadd.f32 %v835, %v1020
    %v1022 = vpop.f32.mrf.mxu0
    %1023 = vmatprep.mubr.bf16.mxu0 0
    %1024 = vmatmul.mubr.bf16.gmra.mxu0 %v948
    %v1025 = vpop.f32.mrf.mxu0
    %v1026 = vadd.f32 %v840, %v1025
    %v1027 = vpop.f32.mrf.mxu0
    %v1028 = vpop.f32.mrf.mxu0
    %v1029 = vadd.f32 %v843, %v1028
    %v1030 = vpop.f32.mrf.mxu0
    %1031 = vmatprep.mubr.bf16.mxu0 0
    %1032 = vmatmul.mubr.bf16.gmra.mxu0 %v951
    %v1033 = vpop.f32.mrf.mxu0
    %v1034 = vadd.f32 %v848, %v1033
    %v1035 = vpop.f32.mrf.mxu0
    %v1036 = vpop.f32.mrf.mxu0
    %v1037 = vadd.f32 %v851, %v1036
    %v1038 = vpop.f32.mrf.mxu0
    %1039 = vmatprep.mubr.bf16.mxu0 0
    %1040 = vmatmul.mubr.bf16.gmra.mxu0 %v954
    %v1041 = vpop.f32.mrf.mxu0
    %v1042 = vadd.f32 %v856, %v1041
    %v1043 = vpop.f32.mrf.mxu0
    %v1044 = vpop.f32.mrf.mxu0
    %v1045 = vadd.f32 %v859, %v1044
    %v1046 = vpop.f32.mrf.mxu0
    %1047 = vmatprep.mubr.bf16.mxu0 0
    %1048 = vmatmul.mubr.bf16.gmra.mxu0 %v957
    %v1049 = vpop.f32.mrf.mxu0
    %v1050 = vadd.f32 %v864, %v1049
    %v1051 = vpop.f32.mrf.mxu0
    %v1052 = vpop.f32.mrf.mxu0
    %v1053 = vadd.f32 %v867, %v1052
    %v1054 = vpop.f32.mrf.mxu0
    %1055 = vdwg.mxu0
    %v1056 = vld [vmem:[%s6] sm:$0xf]
    %v1057 = vld [vmem:[%s6 + $0x4] sm:$0xf]
    %v1058 = vld [vmem:[%s6 + $0x8] sm:$0xf]
    %v1059 = vld [vmem:[%s6 + $0xc] sm:$0xf]
    %v1060 = vld [vmem:[%s6 + $0x10] sm:$0xf]
    %v1061 = vld [vmem:[%s6 + $0x14] sm:$0xf]
    %v1062 = vld [vmem:[%s6 + $0x18] sm:$0xf]
    %v1063 = vld [vmem:[%s6 + $0x1c] sm:$0xf]
    %v1064 = vld [vmem:[%s6 + $0x20] sm:$0xf]
    %v1065 = vld [vmem:[%s6 + $0x24] sm:$0xf]
    %v1066 = vld [vmem:[%s6 + $0x28] sm:$0xf]
    %v1067 = vld [vmem:[%s6 + $0x2c] sm:$0xf]
    %v1068 = vld [vmem:[%s6 + $0x30] sm:$0xf]
    %v1069 = vld [vmem:[%s6 + $0x34] sm:$0xf]
    %v1070 = vld [vmem:[%s6 + $0x38] sm:$0xf]
    %v1071 = vld [vmem:[%s6 + $0x3c] sm:$0xf]
    %v1072 = vunpack.c.l.bf16 %v1056
    %v1073 = vunpack.c.l.bf16 %v1057
    %v1074 = vunpack.c.l.bf16 %v1058
    %v1075 = vunpack.c.l.bf16 %v1059
    %v1076 = vunpack.c.l.bf16 %v1060
    %v1077 = vunpack.c.l.bf16 %v1061
    %v1078 = vunpack.c.l.bf16 %v1062
    %v1079 = vunpack.c.l.bf16 %v1063
    %v1080 = vunpack.c.l.bf16 %v1064
    %v1081 = vunpack.c.l.bf16 %v1065
    %v1082 = vunpack.c.l.bf16 %v1066
    %v1083 = vunpack.c.l.bf16 %v1067
    %v1084 = vunpack.c.l.bf16 %v1068
    %v1085 = vunpack.c.l.bf16 %v1069
    %v1086 = vunpack.c.l.bf16 %v1070
    %v1087 = vunpack.c.l.bf16 %v1071
    %v1088 = vadd.f32 %v994, %v1072
    %v1089 = vadd.f32 %v997, %v1073
    %v1090 = vadd.f32 %v1002, %v1074
    %v1091 = vadd.f32 %v1005, %v1075
    %v1092 = vadd.f32 %v1010, %v1076
    %v1093 = vadd.f32 %v1013, %v1077
    %v1094 = vadd.f32 %v1018, %v1078
    %v1095 = vadd.f32 %v1021, %v1079
    %v1096 = vadd.f32 %v1026, %v1080
    %v1097 = vadd.f32 %v1029, %v1081
    %v1098 = vadd.f32 %v1034, %v1082
    %v1099 = vadd.f32 %v1037, %v1083
    %v1100 = vadd.f32 %v1042, %v1084
    %v1101 = vadd.f32 %v1045, %v1085
    %v1102 = vadd.f32 %v1050, %v1086
    %v1103 = vadd.f32 %v1053, %v1087
    %v1104 = vld [vmem:[%s9] sm:$0x1]
    %v1106 = vlaneseq
    %v1107 = vshrl.u32 %v1106, 7
    %v1108 = vsub.s32 0, %v1107
    %v1109 = vrot.slane %v1104, %v1108
    %v1111 = vadd.f32 %v1088, %v1109
    %v1112 = vadd.f32 %v1089, %v1109
    %v1113 = vadd.f32 %v1090, %v1109
    %v1114 = vadd.f32 %v1091, %v1109
    %v1115 = vadd.f32 %v1092, %v1109
    %v1116 = vadd.f32 %v1093, %v1109
    %v1117 = vadd.f32 %v1094, %v1109
    %v1118 = vadd.f32 %v1095, %v1109
    %v1119 = vadd.f32 %v1096, %v1109
    %v1120 = vadd.f32 %v1097, %v1109
    %v1121 = vadd.f32 %v1098, %v1109
    %v1122 = vadd.f32 %v1099, %v1109
    %v1123 = vadd.f32 %v1100, %v1109
    %v1124 = vadd.f32 %v1101, %v1109
    %v1125 = vadd.f32 %v1102, %v1109
    %v1126 = vadd.f32 %v1103, %v1109
    %v1127 = vmax.f32 %v1111, 0.0
    %v1128 = vmax.f32 %v1112, 0.0
    %v1129 = vmax.f32 %v1113, 0.0
    %v1130 = vmax.f32 %v1114, 0.0
    %v1131 = vmax.f32 %v1115, 0.0
    %v1132 = vmax.f32 %v1116, 0.0
    %v1133 = vmax.f32 %v1117, 0.0
    %v1134 = vmax.f32 %v1118, 0.0
    %v1135 = vmax.f32 %v1119, 0.0
    %v1136 = vmax.f32 %v1120, 0.0
    %v1137 = vmax.f32 %v1121, 0.0
    %v1138 = vmax.f32 %v1122, 0.0
    %v1139 = vmax.f32 %v1123, 0.0
    %v1140 = vmax.f32 %v1124, 0.0
    %v1141 = vmax.f32 %v1125, 0.0
    %v1142 = vmax.f32 %v1126, 0.0
    %v1143 = vld [vmem:[%s10] sm:$0x1]
    %v1144 = vld [vmem:[%s11] sm:$0x1]
    %v1146 = vsel %vm105, %v1143, 0
    %v1149 = vsel %vm105, %v1127, 0
    %v1152 = vsel %vm105, %v1128, 0
    %v1155 = vsel %vm105, %v1129, 0
    %v1158 = vsel %vm105, %v1130, 0
    %v1161 = vsel %vm105, %v1131, 0
    %v1164 = vsel %vm105, %v1132, 0
    %v1167 = vsel %vm105, %v1133, 0
    %v1170 = vsel %vm105, %v1134, 0
    %v1173 = vsel %vm105, %v1135, 0
    %v1176 = vsel %vm105, %v1136, 0
    %v1179 = vsel %vm105, %v1137, 0
    %v1182 = vsel %vm105, %v1138, 0
    %v1185 = vsel %vm105, %v1139, 0
    %v1188 = vsel %vm105, %v1140, 0
    %v1191 = vsel %vm105, %v1141, 0
    %v1194 = vsel %vm105, %v1142, 0
    %1196 = vmatprep.subr.mxu0 0.0
    %1197 = vmatpush1.xpose.msra.mxu0 %v1194
    %1198 = vmatprep.subr.mxu0 0.0
    %1199 = vmatpush1.xpose.msra.mxu0 %v1191
    %1200 = vmatprep.subr.mxu0 0.0
    %1201 = vmatpush1.xpose.msra.mxu0 %v1188
    %1202 = vmatprep.subr.mxu0 0.0
    %1203 = vmatpush1.xpose.msra.mxu0 %v1185
    %1204 = vmatprep.subr.mxu0 0.0
    %1205 = vmatpush1.xpose.msra.mxu0 %v1182
    %1206 = vmatprep.subr.mxu0 0.0
    %1207 = vmatpush1.xpose.msra.mxu0 %v1179
    %1208 = vmatprep.subr.mxu0 0.0
    %1209 = vmatpush1.xpose.msra.mxu0 %v1176
    %1210 = vmatprep.subr.mxu0 0.0
    %1211 = vmatpush1.xpose.msra.mxu0 %v1173
    %1212 = vmatprep.subr.mxu0 0.0
    %1213 = vmatpush1.xpose.msra.mxu0 %v1170
    %1214 = vmatprep.subr.mxu0 0.0
    %1215 = vmatpush1.xpose.msra.mxu0 %v1167
    %1216 = vmatprep.subr.mxu0 0.0
    %1217 = vmatpush1.xpose.msra.mxu0 %v1164
    %1218 = vmatprep.subr.mxu0 0.0
    %1219 = vmatpush1.xpose.msra.mxu0 %v1161
    %1220 = vmatprep.subr.mxu0 0.0
    %1221 = vmatpush1.xpose.msra.mxu0 %v1158
    %1222 = vmatprep.subr.mxu0 0.0
    %1223 = vmatpush1.xpose.msra.mxu0 %v1155
    %1224 = vmatprep.subr.mxu0 0.0
    %1225 = vmatpush1.xpose.msra.mxu0 %v1152
    %1226 = vmatprep.subr.mxu0 0.0
    %1227 = vmatpush1.xpose.msra.mxu0 %v1149
    %1228 = vmatprep.subr.mxu0 0.0
    %1229 = vmatpush2.xpose.msra.mxu0 0.0
    %1230 = vmatprep.subr.mxu0 0.0
    %1231 = vmatpush2.xpose.msra.mxu0 0.0
    %1232 = vmatprep.subr.mxu0 0.0
    %1233 = vmatpush2.xpose.msra.mxu0 0.0
    %1234 = vmatprep.subr.mxu0 0.0
    %1235 = vmatpush2.xpose.msra.mxu0 0.0
    %1236 = vmatprep.subr.mxu0 0.0
    %1237 = vmatpush2.xpose.msra.mxu0 0.0
    %1238 = vmatprep.subr.mxu0 0.0
    %1239 = vmatpush2.xpose.msra.mxu0 0.0
    %1240 = vmatprep.subr.mxu0 0.0
    %1241 = vmatpush2.xpose.msra.mxu0 0.0
    %1242 = vmatprep.subr.mxu0 0.0
    %1243 = vmatpush2.xpose.msra.mxu0 0.0
    %1244 = vmatprep.subr.mxu0 0.0
    %1245 = vmatpush2.xpose.msra.mxu0 0.0
    %1246 = vmatprep.subr.mxu0 0.0
    %1247 = vmatpush2.xpose.msra.mxu0 0.0
    %1248 = vmatprep.subr.mxu0 0.0
    %1249 = vmatpush2.xpose.msra.mxu0 0.0
    %1250 = vmatprep.subr.mxu0 0.0
    %1251 = vmatpush2.xpose.msra.mxu0 0.0
    %1252 = vmatprep.subr.mxu0 0.0
    %1253 = vmatpush2.xpose.msra.mxu0 0.0
    %1254 = vmatprep.subr.mxu0 0.0
    %1255 = vmatpush2.xpose.msra.mxu0 0.0
    %1256 = vmatprep.subr.mxu0 0.0
    %1257 = vmatpush2.xpose.msra.mxu0 0.0
    %1258 = vmatprep.subr.mxu0 0.0
    %1259 = vmatpush2.xpose.msra.mxu0 0.0
    %1260 = vmatprep.mubr.f32.mxu0 0.0
    %1261 = vmatmul.mubr.f32.gmra.mxu0 %v1146
    %v1262 = vpop.f32.mrf.mxu0
    %v1263 = vadd.f32 %v1144, %v1262
    %v1264 = vpop.f32.mrf.mxu0
    %1265 = vdwg.mxu0
    %1266 = vst [vmem:[#allocation3] sm:$0x1] %v1263
    // Predicated region
    $region50: #{tpu_custom_call.1} parent=1 // pred_check
      _
    $region51: #{tpu_custom_call.1} parent=1 // pred_check_branch
      %1268 = sbr.rel (0) target = $region53
    $region52: #{tpu_custom_call.1} parent=1 // pred_region
      %s1270 = ssub.s32 16, 16
      %1271 = vsyncadd [#allocation4], %s1270
      %s1273 = sshll.u32 [#allocation3], 4
      %s1274 = int_to_ptr.vmem [resolvable:$true] %s1273
      %1276 = dma.vmem_to_hbm [thread:$0]  %s1274, 16, %s12, [#allocation4]
    $region53: #{tpu_custom_call.1} parent=1 // pred_fallthru
      _
    // Predicated region
    $region54: #{tpu_custom_call.1} parent=1 // pred_check
      _
    $region55: #{tpu_custom_call.1} parent=1 // pred_check_branch
      %1278 = sbr.rel (0) target = $region57
    $region56: #{tpu_custom_call.1} parent=1 // pred_region
      _
    $region57: #{tpu_custom_call.1} parent=1 // pred_fallthru
      _
    // Predicated region
    $region58: #{tpu_custom_call.1} parent=1 // pred_check
      _
    $region59: #{tpu_custom_call.1} parent=1 // pred_check_branch
      %1280 = sbr.rel (0) target = $region61
    $region60: #{tpu_custom_call.1} parent=1 // pred_region
      %1281 = dma.done [#allocation4], 16
    $region61: #{tpu_custom_call.1} parent=1 // pred_fallthru
      _
    // Predicated region
    $region62: #{tpu_custom_call.1} parent=1 // pred_check
      _
    $region63: #{tpu_custom_call.1} parent=1 // pred_check_branch
      %1283 = sbr.rel (0) target = $region65
    $region64: #{tpu_custom_call.1} parent=1 // pred_region
      _
    $region65: #{tpu_custom_call.1} parent=1 // pred_fallthru
      _
    %1284 = vsyncpa [#allocation4], 1

// kernel: tpu_custom_call.1
$region0: #{tpu_custom_call.1}
  #allocation0 [shape = 'u32[]', space=smem, size = 0x4, offset = 0x4, fixed_abs, tag = 'smem constant byte address 0x4 - core index']
  #allocation1 [shape = 'u32[144,128]{1,0:T(1,128)}', space=vmem, size = 0x12000, scoped, tag = 'internal scratch']
  #allocation2 [shape = 'f32[1,1]{1,0:T(1,128)S(6)}', space=smem, size = 0x200, scoped, tag = 'scoped memory for tpu_custom_call.1']
  %s0 = inlined_call_operand.vmem [shape: s32[128,1], index: 0, kind: input, shape index: {}]
  %s1 = inlined_call_operand.vmem [shape: s32[128,1], index: 1, kind: input, shape index: {}]
  %s2 = inlined_call_operand.vmem [shape: bf16[128,32], index: 2, kind: input, shape index: {}]
  %s3 = inlined_call_operand.vmem [shape: bf16[1,32], index: 3, kind: input, shape index: {}]
  %s4 = inlined_call_operand.<no memory space> [shape: f32[1,1], index: 4, kind: input, shape index: {}]
  %s5 = inlined_call_operand.vmem [shape: bf16[128,64], index: 5, kind: input, shape index: {}]
  %s6 = inlined_call_operand.vmem [shape: bf16[128,32], index: 6, kind: input, shape index: {}]
  %s7 = inlined_call_operand.vmem [shape: bf16[64,32], index: 7, kind: input, shape index: {}]
  %s8 = inlined_call_operand.vmem [shape: bf16[32,32], index: 8, kind: input, shape index: {}]
  %s9 = inlined_call_operand.vmem [shape: f32[1,32], index: 9, kind: input, shape index: {}]
  %s10 = inlined_call_operand.vmem [shape: f32[1,32], index: 10, kind: input, shape index: {}]
  %s11 = inlined_call_operand.vmem [shape: f32[1,128], index: 11, kind: input, shape index: {}]
  %s12 = inlined_call_operand.hbm [shape: f32[1,128], index: 12, kind: output, shape index: {0}]
  %s13 = inlined_call_operand.vmem [shape: bf16[128,32], index: 13, kind: output, shape index: {1}]
  %14 = xla_tuple %s12, %s13
  %s15 = sld [smem:[#allocation0]]
  $region66: #{tpu_custom_call.1} parent=0
    _
  %s17 = ssub.s32 1, %s15
  %s18 = scalar_select 0, %s17, %s15
  %19 = sst [smem:[#allocation2]] %s4
  $region1: #{tpu_custom_call.1} parent=0
    #allocation3 [shape = 'u8[512]{0}', space=vmem, size = 0x400, scoped, tag = 'output window, operand 0, single buffered']
    #allocation4 [shape = 's32[1]{0}', space=sflag, size = 0x4, scoped, tag = 'scoped memory for tpu_custom_call.1']
    %20 = vsyncpa [#allocation4], 0
    // Predicated region
    $region2: #{tpu_custom_call.1} parent=1 // pred_check
      _
    $region3: #{tpu_custom_call.1} parent=1 // pred_check_branch
      %22 = sbr.rel (0) target = $region5
    $region4: #{tpu_custom_call.1} parent=1 // pred_region
      _
    $region5: #{tpu_custom_call.1} parent=1 // pred_fallthru
      _
    // Predicated region
    $region6: #{tpu_custom_call.1} parent=1 // pred_check
      _
    $region7: #{tpu_custom_call.1} parent=1 // pred_check_branch
      %24 = sbr.rel (0) target = $region9
    $region8: #{tpu_custom_call.1} parent=1 // pred_region
      _
    $region9: #{tpu_custom_call.1} parent=1 // pred_fallthru
      _
    // Predicated region
    $region10: #{tpu_custom_call.1} parent=1 // pred_check
      _
    $region11: #{tpu_custom_call.1} parent=1 // pred_check_branch
      %26 = sbr.rel (0) target = $region13
    $region12: #{tpu_custom_call.1} parent=1 // pred_region
      _
    $region13: #{tpu_custom_call.1} parent=1 // pred_fallthru
      _
    // Predicated region
    $region14: #{tpu_custom_call.1} parent=1 // pred_check
      _
    $region15: #{tpu_custom_call.1} parent=1 // pred_check_branch
      %28 = sbr.rel (0) target = $region17
    $region16: #{tpu_custom_call.1} parent=1 // pred_region
      _
    $region17: #{tpu_custom_call.1} parent=1 // pred_fallthru
      _
    // Predicated region
    $region18: #{tpu_custom_call.1} parent=1 // pred_check
      _
    $region19: #{tpu_custom_call.1} parent=1 // pred_check_branch
      %30 = sbr.rel (0) target = $region21
    $region20: #{tpu_custom_call.1} parent=1 // pred_region
      _
    $region21: #{tpu_custom_call.1} parent=1 // pred_fallthru
      _
    // Predicated region
    $region22: #{tpu_custom_call.1} parent=1 // pred_check
      _
    $region23: #{tpu_custom_call.1} parent=1 // pred_check_branch
      %32 = sbr.rel (0) target = $region25
    $region24: #{tpu_custom_call.1} parent=1 // pred_region
      _
    $region25: #{tpu_custom_call.1} parent=1 // pred_fallthru
      _
    // Predicated region
    $region26: #{tpu_custom_call.1} parent=1 // pred_check
      _
    $region27: #{tpu_custom_call.1} parent=1 // pred_check_branch
      %34 = sbr.rel (0) target = $region29
    $region28: #{tpu_custom_call.1} parent=1 // pred_region
      _
    $region29: #{tpu_custom_call.1} parent=1 // pred_fallthru
      _
    // Predicated region
    $region30: #{tpu_custom_call.1} parent=1 // pred_check
      _
    $region31: #{tpu_custom_call.1} parent=1 // pred_check_branch
      %36 = sbr.rel (0) target = $region33
    $region32: #{tpu_custom_call.1} parent=1 // pred_region
      _
    $region33: #{tpu_custom_call.1} parent=1 // pred_fallthru
      _
    // Predicated region
    $region34: #{tpu_custom_call.1} parent=1 // pred_check
      _
    $region35: #{tpu_custom_call.1} parent=1 // pred_check_branch
      %38 = sbr.rel (0) target = $region37
    $region36: #{tpu_custom_call.1} parent=1 // pred_region
      _
    $region37: #{tpu_custom_call.1} parent=1 // pred_fallthru
      _
    // Predicated region
    $region38: #{tpu_custom_call.1} parent=1 // pred_check
      _
    $region39: #{tpu_custom_call.1} parent=1 // pred_check_branch
      %40 = sbr.rel (0) target = $region41
    $region40: #{tpu_custom_call.1} parent=1 // pred_region
      _
    $region41: #{tpu_custom_call.1} parent=1 // pred_fallthru
      _
    // Predicated region
    $region42: #{tpu_custom_call.1} parent=1 // pred_check
      _
    $region43: #{tpu_custom_call.1} parent=1 // pred_check_branch
      %42 = sbr.rel (0) target = $region45
    $region44: #{tpu_custom_call.1} parent=1 // pred_region
      _
    $region45: #{tpu_custom_call.1} parent=1 // pred_fallthru
      _
    // Predicated region
    $region46: #{tpu_custom_call.1} parent=1 // pred_check
      _
    $region47: #{tpu_custom_call.1} parent=1 // pred_check_branch
      %44 = sbr.rel (0) target = $region49
    $region48: #{tpu_custom_call.1} parent=1 // pred_region
      _
    $region49: #{tpu_custom_call.1} parent=1 // pred_fallthru
      _
    %v46 = vld [vmem:[%s3] sm:$0x1]
    %v47 = vld [vmem:[%s2] sm:$0xf]
    %v48 = vld [vmem:[%s2 + $0x4] sm:$0xf]
    %v49 = vld [vmem:[%s2 + $0x8] sm:$0xf]
    %v50 = vld [vmem:[%s2 + $0xc] sm:$0xf]
    %v51 = vld [vmem:[%s2 + $0x10] sm:$0xf]
    %v52 = vld [vmem:[%s2 + $0x14] sm:$0xf]
    %v53 = vld [vmem:[%s2 + $0x18] sm:$0xf]
    %v54 = vld [vmem:[%s2 + $0x1c] sm:$0xf]
    %v55 = vld [vmem:[%s2 + $0x20] sm:$0xf]
    %v56 = vld [vmem:[%s2 + $0x24] sm:$0xf]
    %v57 = vld [vmem:[%s2 + $0x28] sm:$0xf]
    %v58 = vld [vmem:[%s2 + $0x2c] sm:$0xf]
    %v59 = vld [vmem:[%s2 + $0x30] sm:$0xf]
    %v60 = vld [vmem:[%s2 + $0x34] sm:$0xf]
    %v61 = vld [vmem:[%s2 + $0x38] sm:$0xf]
    %v62 = vld [vmem:[%s2 + $0x3c] sm:$0xf]
    %s63 = sld [smem:[#allocation2]]
    %v64 = vstv %s63
    %v81 = vunpack.c.l.b16 %v47
    %v82 = vunpack.c.l.b16 %v48
    %v83 = vunpack.c.l.b16 %v49
    %v84 = vunpack.c.l.b16 %v50
    %v85 = vunpack.c.l.b16 %v51
    %v86 = vunpack.c.l.b16 %v52
    %v87 = vunpack.c.l.b16 %v53
    %v88 = vunpack.c.l.b16 %v54
    %v89 = vunpack.c.l.b16 %v55
    %v90 = vunpack.c.l.b16 %v56
    %v91 = vunpack.c.l.b16 %v57
    %v92 = vunpack.c.l.b16 %v58
    %v93 = vunpack.c.l.b16 %v59
    %v94 = vunpack.c.l.b16 %v60
    %v95 = vunpack.c.l.b16 %v61
    %v96 = vunpack.c.l.b16 %v62
    %v97 = vpack.c.b16 %v82, %v81
    %v98 = vpack.c.b16 %v84, %v83
    %v99 = vpack.c.b16 %v86, %v85
    %v100 = vpack.c.b16 %v88, %v87
    %v101 = vpack.c.b16 %v90, %v89
    %v102 = vpack.c.b16 %v92, %v91
    %v103 = vpack.c.b16 %v94, %v93
    %v104 = vpack.c.b16 %v96, %v95
    %vm105 = vcmask 261120
    %v107 = vsel %vm105, %v46, 0
    %v110 = vsel %vm105, %v97, 0
    %v113 = vsel %vm105, %v98, 0
    %v116 = vsel %vm105, %v99, 0
    %v119 = vsel %vm105, %v100, 0
    %v122 = vsel %vm105, %v101, 0
    %v125 = vsel %vm105, %v102, 0
    %v128 = vsel %vm105, %v103, 0
    %v131 = vsel %vm105, %v104, 0
    %133 = vmatprep.subr.bf16.mxu0 0
    %134 = vmatpush1.bf16.xpose.msra.mxu0 %v131
    %135 = vmatprep.subr.bf16.mxu0 0
    %136 = vmatpush1.bf16.xpose.msra.mxu0 %v128
    %137 = vmatprep.subr.bf16.mxu0 0
    %138 = vmatpush1.bf16.xpose.msra.mxu0 %v125
    %139 = vmatprep.subr.bf16.mxu0 0
    %140 = vmatpush1.bf16.xpose.msra.mxu0 %v122
    %141 = vmatprep.subr.bf16.mxu0 0
    %142 = vmatpush1.bf16.xpose.msra.mxu0 %v119
    %143 = vmatprep.subr.bf16.mxu0 0
    %144 = vmatpush1.bf16.xpose.msra.mxu0 %v116
    %145 = vmatprep.subr.bf16.mxu0 0
    %146 = vmatpush1.bf16.xpose.msra.mxu0 %v113
    %147 = vmatprep.subr.bf16.mxu0 0
    %148 = vmatpush1.bf16.xpose.msra.mxu0 %v110
    %149 = vmatprep.subr.bf16.mxu0 0
    %150 = vmatpush2.bf16.xpose.msra.mxu0 0
    %151 = vmatprep.subr.bf16.mxu0 0
    %152 = vmatpush2.bf16.xpose.msra.mxu0 0
    %153 = vmatprep.subr.bf16.mxu0 0
    %154 = vmatpush2.bf16.xpose.msra.mxu0 0
    %155 = vmatprep.subr.bf16.mxu0 0
    %156 = vmatpush2.bf16.xpose.msra.mxu0 0
    %157 = vmatprep.subr.bf16.mxu0 0
    %158 = vmatpush2.bf16.xpose.msra.mxu0 0
    %159 = vmatprep.subr.bf16.mxu0 0
    %160 = vmatpush2.bf16.xpose.msra.mxu0 0
    %161 = vmatprep.subr.bf16.mxu0 0
    %162 = vmatpush2.bf16.xpose.msra.mxu0 0
    %163 = vmatprep.subr.bf16.mxu0 0
    %164 = vmatpush2.bf16.xpose.msra.mxu0 0
    %165 = vmatprep.mubr.bf16.mxu0 0
    %166 = vmatmul.mubr.bf16.gmra.mxu0 %v107
    %v167 = vpop.f32.mrf.mxu0
    %v168 = vadd.f32 %v64, %v167
    %v169 = vpop.f32.mrf.mxu0
    %v170 = vpop.f32.mrf.mxu0
    %v171 = vpop.f32.mrf.mxu0
    %172 = vdwg.mxu0
    %v173 = vld [vmem:[%s0] sm:$0xff]
    %v174 = vld [vmem:[%s0 + $0x8] sm:$0xff]
    %v175 = vld [vmem:[%s0 + $0x10] sm:$0xff]
    %v176 = vld [vmem:[%s0 + $0x18] sm:$0xff]
    %v177 = vld [vmem:[%s0 + $0x20] sm:$0xff]
    %v178 = vld [vmem:[%s0 + $0x28] sm:$0xff]
    %v179 = vld [vmem:[%s0 + $0x30] sm:$0xff]
    %v180 = vld [vmem:[%s0 + $0x38] sm:$0xff]
    %v181 = vld [vmem:[%s0 + $0x40] sm:$0xff]
    %v182 = vld [vmem:[%s0 + $0x48] sm:$0xff]
    %v183 = vld [vmem:[%s0 + $0x50] sm:$0xff]
    %v184 = vld [vmem:[%s0 + $0x58] sm:$0xff]
    %v185 = vld [vmem:[%s0 + $0x60] sm:$0xff]
    %v186 = vld [vmem:[%s0 + $0x68] sm:$0xff]
    %v187 = vld [vmem:[%s0 + $0x70] sm:$0xff]
    %v188 = vld [vmem:[%s0 + $0x78] sm:$0xff]
    %v189 = vld [vmem:[%s1] sm:$0xff]
    %v190 = vld [vmem:[%s1 + $0x8] sm:$0xff]
    %v191 = vld [vmem:[%s1 + $0x10] sm:$0xff]
    %v192 = vld [vmem:[%s1 + $0x18] sm:$0xff]
    %v193 = vld [vmem:[%s1 + $0x20] sm:$0xff]
    %v194 = vld [vmem:[%s1 + $0x28] sm:$0xff]
    %v195 = vld [vmem:[%s1 + $0x30] sm:$0xff]
    %v196 = vld [vmem:[%s1 + $0x38] sm:$0xff]
    %v197 = vld [vmem:[%s1 + $0x40] sm:$0xff]
    %v198 = vld [vmem:[%s1 + $0x48] sm:$0xff]
    %v199 = vld [vmem:[%s1 + $0x50] sm:$0xff]
    %v200 = vld [vmem:[%s1 + $0x58] sm:$0xff]
    %v201 = vld [vmem:[%s1 + $0x60] sm:$0xff]
    %v202 = vld [vmem:[%s1 + $0x68] sm:$0xff]
    %v203 = vld [vmem:[%s1 + $0x70] sm:$0xff]
    %v204 = vld [vmem:[%s1 + $0x78] sm:$0xff]
    %v205 = vlaneseq
    %v206 = vand.u32 %v205, 127
    %207 = vset.pattern.permute.xlu0 0
    %208 = vperm.xlu0 %207, %v173
    %v209 = vpop.permute.xlu0 %208
    %210 = vset.pattern.permute.xlu0 0
    %211 = vperm.xlu0 %210, %v174
    %v212 = vpop.permute.xlu0 %211
    %213 = vset.pattern.permute.xlu0 0
    %214 = vperm.xlu0 %213, %v175
    %v215 = vpop.permute.xlu0 %214
    %216 = vset.pattern.permute.xlu0 0
    %217 = vperm.xlu0 %216, %v176
    %v218 = vpop.permute.xlu0 %217
    %219 = vset.pattern.permute.xlu0 0
    %220 = vperm.xlu0 %219, %v177
    %v221 = vpop.permute.xlu0 %220
    %222 = vset.pattern.permute.xlu0 0
    %223 = vperm.xlu0 %222, %v178
    %v224 = vpop.permute.xlu0 %223
    %225 = vset.pattern.permute.xlu0 0
    %226 = vperm.xlu0 %225, %v179
    %v227 = vpop.permute.xlu0 %226
    %228 = vset.pattern.permute.xlu0 0
    %229 = vperm.xlu0 %228, %v180
    %v230 = vpop.permute.xlu0 %229
    %231 = vset.pattern.permute.xlu0 0
    %232 = vperm.xlu0 %231, %v181
    %v233 = vpop.permute.xlu0 %232
    %234 = vset.pattern.permute.xlu0 0
    %235 = vperm.xlu0 %234, %v182
    %v236 = vpop.permute.xlu0 %235
    %237 = vset.pattern.permute.xlu0 0
    %238 = vperm.xlu0 %237, %v183
    %v239 = vpop.permute.xlu0 %238
    %240 = vset.pattern.permute.xlu0 0
    %241 = vperm.xlu0 %240, %v184
    %v242 = vpop.permute.xlu0 %241
    %243 = vset.pattern.permute.xlu0 0
    %244 = vperm.xlu0 %243, %v185
    %v245 = vpop.permute.xlu0 %244
    %246 = vset.pattern.permute.xlu0 0
    %247 = vperm.xlu0 %246, %v186
    %v248 = vpop.permute.xlu0 %247
    %249 = vset.pattern.permute.xlu0 0
    %250 = vperm.xlu0 %249, %v187
    %v251 = vpop.permute.xlu0 %250
    %252 = vset.pattern.permute.xlu0 0
    %253 = vperm.xlu0 %252, %v188
    %v254 = vpop.permute.xlu0 %253
    %vm255 = vcmp.ge.s32.totalorder %v206, %v209
    %vm256 = vcmp.ge.s32.totalorder %v206, %v212
    %vm257 = vcmp.ge.s32.totalorder %v206, %v215
    %vm258 = vcmp.ge.s32.totalorder %v206, %v218
    %vm259 = vcmp.ge.s32.totalorder %v206, %v221
    %vm260 = vcmp.ge.s32.totalorder %v206, %v224
    %vm261 = vcmp.ge.s32.totalorder %v206, %v227
    %vm262 = vcmp.ge.s32.totalorder %v206, %v230
    %vm263 = vcmp.ge.s32.totalorder %v206, %v233
    %vm264 = vcmp.ge.s32.totalorder %v206, %v236
    %vm265 = vcmp.ge.s32.totalorder %v206, %v239
    %vm266 = vcmp.ge.s32.totalorder %v206, %v242
    %vm267 = vcmp.ge.s32.totalorder %v206, %v245
    %vm268 = vcmp.ge.s32.totalorder %v206, %v248
    %vm269 = vcmp.ge.s32.totalorder %v206, %v251
    %vm270 = vcmp.ge.s32.totalorder %v206, %v254
    %271 = vset.pattern.permute.xlu0 0
    %272 = vperm.xlu0 %271, %v189
    %v273 = vpop.permute.xlu0 %272
    %274 = vset.pattern.permute.xlu0 0
    %275 = vperm.xlu0 %274, %v190
    %v276 = vpop.permute.xlu0 %275
    %277 = vset.pattern.permute.xlu0 0
    %278 = vperm.xlu0 %277, %v191
    %v279 = vpop.permute.xlu0 %278
    %280 = vset.pattern.permute.xlu0 0
    %281 = vperm.xlu0 %280, %v192
    %v282 = vpop.permute.xlu0 %281
    %283 = vset.pattern.permute.xlu0 0
    %284 = vperm.xlu0 %283, %v193
    %v285 = vpop.permute.xlu0 %284
    %286 = vset.pattern.permute.xlu0 0
    %287 = vperm.xlu0 %286, %v194
    %v288 = vpop.permute.xlu0 %287
    %289 = vset.pattern.permute.xlu0 0
    %290 = vperm.xlu0 %289, %v195
    %v291 = vpop.permute.xlu0 %290
    %292 = vset.pattern.permute.xlu0 0
    %293 = vperm.xlu0 %292, %v196
    %v294 = vpop.permute.xlu0 %293
    %295 = vset.pattern.permute.xlu0 0
    %296 = vperm.xlu0 %295, %v197
    %v297 = vpop.permute.xlu0 %296
    %298 = vset.pattern.permute.xlu0 0
    %299 = vperm.xlu0 %298, %v198
    %v300 = vpop.permute.xlu0 %299
    %301 = vset.pattern.permute.xlu0 0
    %302 = vperm.xlu0 %301, %v199
    %v303 = vpop.permute.xlu0 %302
    %304 = vset.pattern.permute.xlu0 0
    %305 = vperm.xlu0 %304, %v200
    %v306 = vpop.permute.xlu0 %305
    %307 = vset.pattern.permute.xlu0 0
    %308 = vperm.xlu0 %307, %v201
    %v309 = vpop.permute.xlu0 %308
    %310 = vset.pattern.permute.xlu0 0
    %311 = vperm.xlu0 %310, %v202
    %v312 = vpop.permute.xlu0 %311
    %313 = vset.pattern.permute.xlu0 0
    %314 = vperm.xlu0 %313, %v203
    %v315 = vpop.permute.xlu0 %314
    %316 = vset.pattern.permute.xlu0 0
    %317 = vperm.xlu0 %316, %v204
    %v318 = vpop.permute.xlu0 %317
    %vm319 = vcmp.le.s32.totalorder %v206, %v273
    %vm320 = vcmp.le.s32.totalorder %v206, %v276
    %vm321 = vcmp.le.s32.totalorder %v206, %v279
    %vm322 = vcmp.le.s32.totalorder %v206, %v282
    %vm323 = vcmp.le.s32.totalorder %v206, %v285
    %vm324 = vcmp.le.s32.totalorder %v206, %v288
    %vm325 = vcmp.le.s32.totalorder %v206, %v291
    %vm326 = vcmp.le.s32.totalorder %v206, %v294
    %vm327 = vcmp.le.s32.totalorder %v206, %v297
    %vm328 = vcmp.le.s32.totalorder %v206, %v300
    %vm329 = vcmp.le.s32.totalorder %v206, %v303
    %vm330 = vcmp.le.s32.totalorder %v206, %v306
    %vm331 = vcmp.le.s32.totalorder %v206, %v309
    %vm332 = vcmp.le.s32.totalorder %v206, %v312
    %vm333 = vcmp.le.s32.totalorder %v206, %v315
    %vm334 = vcmp.le.s32.totalorder %v206, %v318
    %vm335 = vmand %vm255, %vm319
    %vm336 = vmand %vm256, %vm320
    %vm337 = vmand %vm257, %vm321
    %vm338 = vmand %vm258, %vm322
    %vm339 = vmand %vm259, %vm323
    %vm340 = vmand %vm260, %vm324
    %vm341 = vmand %vm261, %vm325
    %vm342 = vmand %vm262, %vm326
    %vm343 = vmand %vm263, %vm327
    %vm344 = vmand %vm264, %vm328
    %vm345 = vmand %vm265, %vm329
    %vm346 = vmand %vm266, %vm330
    %vm347 = vmand %vm267, %vm331
    %vm348 = vmand %vm268, %vm332
    %vm349 = vmand %vm269, %vm333
    %vm350 = vmand %vm270, %vm334
    %v351 = vlaneseq
    %v352 = vshrl.u32 %v351, 7
    %v353 = vsub.s32 0, %v352
    %v354 = vrot.slane %v168, %v353
    %v355 = vsel %vm335, %v354, -1e+30
    %v356 = vsel %vm336, %v354, -1e+30
    %v357 = vsel %vm337, %v354, -1e+30
    %v358 = vsel %vm338, %v354, -1e+30
    %v359 = vsel %vm339, %v354, -1e+30
    %v360 = vsel %vm340, %v354, -1e+30
    %v361 = vsel %vm341, %v354, -1e+30
    %v362 = vsel %vm342, %v354, -1e+30
    %v363 = vsel %vm343, %v354, -1e+30
    %v364 = vsel %vm344, %v354, -1e+30
    %v365 = vsel %vm345, %v354, -1e+30
    %v366 = vsel %vm346, %v354, -1e+30
    %v367 = vsel %vm347, %v354, -1e+30
    %v368 = vsel %vm348, %v354, -1e+30
    %v369 = vsel %vm349, %v354, -1e+30
    %v370 = vsel %vm350, %v354, -1e+30
    %371 = vmax.xlane.f32.xlu0 %v355
    %v372 = vpop.xlane.xlu0 %371
    %373 = vmax.xlane.f32.xlu0 %v356
    %v374 = vpop.xlane.xlu0 %373
    %375 = vmax.xlane.f32.xlu0 %v357
    %v376 = vpop.xlane.xlu0 %375
    %377 = vmax.xlane.f32.xlu0 %v358
    %v378 = vpop.xlane.xlu0 %377
    %379 = vmax.xlane.f32.xlu0 %v359
    %v380 = vpop.xlane.xlu0 %379
    %381 = vmax.xlane.f32.xlu0 %v360
    %v382 = vpop.xlane.xlu0 %381
    %383 = vmax.xlane.f32.xlu0 %v361
    %v384 = vpop.xlane.xlu0 %383
    %385 = vmax.xlane.f32.xlu0 %v362
    %v386 = vpop.xlane.xlu0 %385
    %387 = vmax.xlane.f32.xlu0 %v363
    %v388 = vpop.xlane.xlu0 %387
    %389 = vmax.xlane.f32.xlu0 %v364
    %v390 = vpop.xlane.xlu0 %389
    %391 = vmax.xlane.f32.xlu0 %v365
    %v392 = vpop.xlane.xlu0 %391
    %393 = vmax.xlane.f32.xlu0 %v366
    %v394 = vpop.xlane.xlu0 %393
    %395 = vmax.xlane.f32.xlu0 %v367
    %v396 = vpop.xlane.xlu0 %395
    %397 = vmax.xlane.f32.xlu0 %v368
    %v398 = vpop.xlane.xlu0 %397
    %399 = vmax.xlane.f32.xlu0 %v369
    %v400 = vpop.xlane.xlu0 %399
    %401 = vmax.xlane.f32.xlu0 %v370
    %v402 = vpop.xlane.xlu0 %401
    %v403 = vsub.f32 %v355, %v372
    %v404 = vsub.f32 %v356, %v374
    %v405 = vsub.f32 %v357, %v376
    %v406 = vsub.f32 %v358, %v378
    %v407 = vsub.f32 %v359, %v380
    %v408 = vsub.f32 %v360, %v382
    %v409 = vsub.f32 %v361, %v384
    %v410 = vsub.f32 %v362, %v386
    %v411 = vsub.f32 %v363, %v388
    %v412 = vsub.f32 %v364, %v390
    %v413 = vsub.f32 %v365, %v392
    %v414 = vsub.f32 %v366, %v394
    %v415 = vsub.f32 %v367, %v396
    %v416 = vsub.f32 %v368, %v398
    %v417 = vsub.f32 %v369, %v400
    %v418 = vsub.f32 %v370, %v402
    %v419 = vmul.f32 %v403, 1.442695
    %v420 = vpow.pop %v419
    %v421 = vmul.f32 %v404, 1.442695
    %v422 = vpow.pop %v421
    %v423 = vmul.f32 %v405, 1.442695
    %v424 = vpow.pop %v423
    %v425 = vmul.f32 %v406, 1.442695
    %v426 = vpow.pop %v425
    %v427 = vmul.f32 %v407, 1.442695
    %v428 = vpow.pop %v427
    %v429 = vmul.f32 %v408, 1.442695
    %v430 = vpow.pop %v429
    %v431 = vmul.f32 %v409, 1.442695
    %v432 = vpow.pop %v431
    %v433 = vmul.f32 %v410, 1.442695
    %v434 = vpow.pop %v433
    %v435 = vmul.f32 %v411, 1.442695
    %v436 = vpow.pop %v435
    %v437 = vmul.f32 %v412, 1.442695
    %v438 = vpow.pop %v437
    %v439 = vmul.f32 %v413, 1.442695
    %v440 = vpow.pop %v439
    %v441 = vmul.f32 %v414, 1.442695
    %v442 = vpow.pop %v441
    %v443 = vmul.f32 %v415, 1.442695
    %v444 = vpow.pop %v443
    %v445 = vmul.f32 %v416, 1.442695
    %v446 = vpow.pop %v445
    %v447 = vmul.f32 %v417, 1.442695
    %v448 = vpow.pop %v447
    %v449 = vmul.f32 %v418, 1.442695
    %v450 = vpow.pop %v449
    %451 = vadd.xlane.f32.xlu0 %v420
    %v452 = vpop.xlane.xlu0 %451
    %453 = vadd.xlane.f32.xlu0 %v422
    %v454 = vpop.xlane.xlu0 %453
    %455 = vadd.xlane.f32.xlu0 %v424
    %v456 = vpop.xlane.xlu0 %455
    %457 = vadd.xlane.f32.xlu0 %v426
    %v458 = vpop.xlane.xlu0 %457
    %459 = vadd.xlane.f32.xlu0 %v428
    %v460 = vpop.xlane.xlu0 %459
    %461 = vadd.xlane.f32.xlu0 %v430
    %v462 = vpop.xlane.xlu0 %461
    %463 = vadd.xlane.f32.xlu0 %v432
    %v464 = vpop.xlane.xlu0 %463
    %465 = vadd.xlane.f32.xlu0 %v434
    %v466 = vpop.xlane.xlu0 %465
    %467 = vadd.xlane.f32.xlu0 %v436
    %v468 = vpop.xlane.xlu0 %467
    %469 = vadd.xlane.f32.xlu0 %v438
    %v470 = vpop.xlane.xlu0 %469
    %471 = vadd.xlane.f32.xlu0 %v440
    %v472 = vpop.xlane.xlu0 %471
    %473 = vadd.xlane.f32.xlu0 %v442
    %v474 = vpop.xlane.xlu0 %473
    %475 = vadd.xlane.f32.xlu0 %v444
    %v476 = vpop.xlane.xlu0 %475
    %477 = vadd.xlane.f32.xlu0 %v446
    %v478 = vpop.xlane.xlu0 %477
    %479 = vadd.xlane.f32.xlu0 %v448
    %v480 = vpop.xlane.xlu0 %479
    %481 = vadd.xlane.f32.xlu0 %v450
    %v482 = vpop.xlane.xlu0 %481
    %v483 = vpack.c.bf16 %v422, %v420
    %v484 = vpack.c.bf16 %v426, %v424
    %v485 = vpack.c.bf16 %v430, %v428
    %v486 = vpack.c.bf16 %v434, %v432
    %v487 = vpack.c.bf16 %v438, %v436
    %v488 = vpack.c.bf16 %v442, %v440
    %v489 = vpack.c.bf16 %v446, %v444
    %v490 = vpack.c.bf16 %v450, %v448
    %499 = vmatprep.subr.bf16.mxu0 0
    %500 = vmatpush1.bf16.msra.mxu0 %v104
    %501 = vmatprep.subr.bf16.mxu0 0
    %502 = vmatpush1.bf16.msra.mxu0 %v103
    %503 = vmatprep.subr.bf16.mxu0 0
    %504 = vmatpush1.bf16.msra.mxu0 %v102
    %505 = vmatprep.subr.bf16.mxu0 0
    %506 = vmatpush1.bf16.msra.mxu0 %v101
    %507 = vmatprep.subr.bf16.mxu0 0
    %508 = vmatpush1.bf16.msra.mxu0 %v100
    %509 = vmatprep.subr.bf16.mxu0 0
    %510 = vmatpush1.bf16.msra.mxu0 %v99
    %511 = vmatprep.subr.bf16.mxu0 0
    %512 = vmatpush1.bf16.msra.mxu0 %v98
    %513 = vmatprep.subr.bf16.mxu0 0
    %514 = vmatpush1.bf16.msra.mxu0 %v97
    %515 = vmatprep.subr.bf16.mxu0 0
    %516 = vmatpush2.bf16.msra.mxu0 0
    %517 = vmatprep.subr.bf16.mxu0 0
    %518 = vmatpush2.bf16.msra.mxu0 0
    %519 = vmatprep.subr.bf16.mxu0 0
    %520 = vmatpush2.bf16.msra.mxu0 0
    %521 = vmatprep.subr.bf16.mxu0 0
    %522 = vmatpush2.bf16.msra.mxu0 0
    %523 = vmatprep.subr.bf16.mxu0 0
    %524 = vmatpush2.bf16.msra.mxu0 0
    %525 = vmatprep.subr.bf16.mxu0 0
    %526 = vmatpush2.bf16.msra.mxu0 0
    %527 = vmatprep.subr.bf16.mxu0 0
    %528 = vmatpush2.bf16.msra.mxu0 0
    %529 = vmatprep.subr.bf16.mxu0 0
    %530 = vmatpush2.bf16.msra.mxu0 0
    %531 = vmatprep.mubr.bf16.mxu0 0
    %532 = vmatmul.mubr.bf16.gmra.mxu0 %v483
    %v533 = vpop.f32.mrf.mxu0
    %v534 = vadd.f32 0.0, %v533
    %v535 = vpop.f32.mrf.mxu0
    %v536 = vpop.f32.mrf.mxu0
    %v537 = vadd.f32 0.0, %v536
    %v538 = vpop.f32.mrf.mxu0
    %539 = vmatprep.mubr.bf16.mxu0 0
    %540 = vmatmul.mubr.bf16.gmra.mxu0 %v484
    %v541 = vpop.f32.mrf.mxu0
    %v542 = vadd.f32 0.0, %v541
    %v543 = vpop.f32.mrf.mxu0
    %v544 = vpop.f32.mrf.mxu0
    %v545 = vadd.f32 0.0, %v544
    %v546 = vpop.f32.mrf.mxu0
    %547 = vmatprep.mubr.bf16.mxu0 0
    %548 = vmatmul.mubr.bf16.gmra.mxu0 %v485
    %v549 = vpop.f32.mrf.mxu0
    %v550 = vadd.f32 0.0, %v549
    %v551 = vpop.f32.mrf.mxu0
    %v552 = vpop.f32.mrf.mxu0
    %v553 = vadd.f32 0.0, %v552
    %v554 = vpop.f32.mrf.mxu0
    %555 = vmatprep.mubr.bf16.mxu0 0
    %556 = vmatmul.mubr.bf16.gmra.mxu0 %v486
    %v557 = vpop.f32.mrf.mxu0
    %v558 = vadd.f32 0.0, %v557
    %v559 = vpop.f32.mrf.mxu0
    %v560 = vpop.f32.mrf.mxu0
    %v561 = vadd.f32 0.0, %v560
    %v562 = vpop.f32.mrf.mxu0
    %563 = vmatprep.mubr.bf16.mxu0 0
    %564 = vmatmul.mubr.bf16.gmra.mxu0 %v487
    %v565 = vpop.f32.mrf.mxu0
    %v566 = vadd.f32 0.0, %v565
    %v567 = vpop.f32.mrf.mxu0
    %v568 = vpop.f32.mrf.mxu0
    %v569 = vadd.f32 0.0, %v568
    %v570 = vpop.f32.mrf.mxu0
    %571 = vmatprep.mubr.bf16.mxu0 0
    %572 = vmatmul.mubr.bf16.gmra.mxu0 %v488
    %v573 = vpop.f32.mrf.mxu0
    %v574 = vadd.f32 0.0, %v573
    %v575 = vpop.f32.mrf.mxu0
    %v576 = vpop.f32.mrf.mxu0
    %v577 = vadd.f32 0.0, %v576
    %v578 = vpop.f32.mrf.mxu0
    %579 = vmatprep.mubr.bf16.mxu0 0
    %580 = vmatmul.mubr.bf16.gmra.mxu0 %v489
    %v581 = vpop.f32.mrf.mxu0
    %v582 = vadd.f32 0.0, %v581
    %v583 = vpop.f32.mrf.mxu0
    %v584 = vpop.f32.mrf.mxu0
    %v585 = vadd.f32 0.0, %v584
    %v586 = vpop.f32.mrf.mxu0
    %587 = vmatprep.mubr.bf16.mxu0 0
    %588 = vmatmul.mubr.bf16.gmra.mxu0 %v490
    %v589 = vpop.f32.mrf.mxu0
    %v590 = vadd.f32 0.0, %v589
    %v591 = vpop.f32.mrf.mxu0
    %v592 = vpop.f32.mrf.mxu0
    %v593 = vadd.f32 0.0, %v592
    %v594 = vpop.f32.mrf.mxu0
    %595 = vdwg.mxu0
    %v596 = vrcp.pop %v452
    %v597 = vrcp.pop %v454
    %v598 = vrcp.pop %v456
    %v599 = vrcp.pop %v458
    %v600 = vrcp.pop %v460
    %v601 = vrcp.pop %v462
    %v602 = vrcp.pop %v464
    %v603 = vrcp.pop %v466
    %v604 = vrcp.pop %v468
    %v605 = vrcp.pop %v470
    %v606 = vrcp.pop %v472
    %v607 = vrcp.pop %v474
    %v608 = vrcp.pop %v476
    %v609 = vrcp.pop %v478
    %v610 = vrcp.pop %v480
    %v611 = vrcp.pop %v482
    %v612 = vmul.f32 %v534, %v596
    %v613 = vmul.f32 %v537, %v597
    %v614 = vmul.f32 %v542, %v598
    %v615 = vmul.f32 %v545, %v599
    %v616 = vmul.f32 %v550, %v600
    %v617 = vmul.f32 %v553, %v601
    %v618 = vmul.f32 %v558, %v602
    %v619 = vmul.f32 %v561, %v603
    %v620 = vmul.f32 %v566, %v604
    %v621 = vmul.f32 %v569, %v605
    %v622 = vmul.f32 %v574, %v606
    %v623 = vmul.f32 %v577, %v607
    %v624 = vmul.f32 %v582, %v608
    %v625 = vmul.f32 %v585, %v609
    %v626 = vmul.f32 %v590, %v610
    %v627 = vmul.f32 %v593, %v611
    %v628 = vpack.c.bf16 %v613, %v612
    %v629 = vpack.c.bf16 %v615, %v614
    %v630 = vpack.c.bf16 %v617, %v616
    %v631 = vpack.c.bf16 %v619, %v618
    %v632 = vpack.c.bf16 %v621, %v620
    %v633 = vpack.c.bf16 %v623, %v622
    %v634 = vpack.c.bf16 %v625, %v624
    %v635 = vpack.c.bf16 %v627, %v626
    %v644 = vunpack.c.l.b16 %v628
    %v645 = vunpack.c.h.b16 %v628
    %v646 = vunpack.c.l.b16 %v629
    %v647 = vunpack.c.h.b16 %v629
    %v648 = vunpack.c.l.b16 %v630
    %v649 = vunpack.c.h.b16 %v630
    %v650 = vunpack.c.l.b16 %v631
    %v651 = vunpack.c.h.b16 %v631
    %v652 = vunpack.c.l.b16 %v632
    %v653 = vunpack.c.h.b16 %v632
    %v654 = vunpack.c.l.b16 %v633
    %v655 = vunpack.c.h.b16 %v633
    %v656 = vunpack.c.l.b16 %v634
    %v657 = vunpack.c.h.b16 %v634
    %v658 = vunpack.c.l.b16 %v635
    %v659 = vunpack.c.h.b16 %v635
    %v660 = vpack.c.b16 %v644, %v644
    %v661 = vpack.c.b16 %v645, %v645
    %v662 = vpack.c.b16 %v646, %v646
    %v663 = vpack.c.b16 %v647, %v647
    %v664 = vpack.c.b16 %v648, %v648
    %v665 = vpack.c.b16 %v649, %v649
    %v666 = vpack.c.b16 %v650, %v650
    %v667 = vpack.c.b16 %v651, %v651
    %v668 = vpack.c.b16 %v652, %v652
    %v669 = vpack.c.b16 %v653, %v653
    %v670 = vpack.c.b16 %v654, %v654
    %v671 = vpack.c.b16 %v655, %v655
    %v672 = vpack.c.b16 %v656, %v656
    %v673 = vpack.c.b16 %v657, %v657
    %v674 = vpack.c.b16 %v658, %v658
    %v675 = vpack.c.b16 %v659, %v659
    %vm692 = vcmask 257024
    %693 = vst.msk [vmem:[%s13] sm:$0xf] %vm692, %v660
    %694 = vst.msk [vmem:[%s13 + $0x4] sm:$0xf] %vm692, %v661
    %695 = vst.msk [vmem:[%s13 + $0x8] sm:$0xf] %vm692, %v662
    %696 = vst.msk [vmem:[%s13 + $0xc] sm:$0xf] %vm692, %v663
    %697 = vst.msk [vmem:[%s13 + $0x10] sm:$0xf] %vm692, %v664
    %698 = vst.msk [vmem:[%s13 + $0x14] sm:$0xf] %vm692, %v665
    %699 = vst.msk [vmem:[%s13 + $0x18] sm:$0xf] %vm692, %v666
    %700 = vst.msk [vmem:[%s13 + $0x1c] sm:$0xf] %vm692, %v667
    %701 = vst.msk [vmem:[%s13 + $0x20] sm:$0xf] %vm692, %v668
    %702 = vst.msk [vmem:[%s13 + $0x24] sm:$0xf] %vm692, %v669
    %703 = vst.msk [vmem:[%s13 + $0x28] sm:$0xf] %vm692, %v670
    %704 = vst.msk [vmem:[%s13 + $0x2c] sm:$0xf] %vm692, %v671
    %705 = vst.msk [vmem:[%s13 + $0x30] sm:$0xf] %vm692, %v672
    %706 = vst.msk [vmem:[%s13 + $0x34] sm:$0xf] %vm692, %v673
    %707 = vst.msk [vmem:[%s13 + $0x38] sm:$0xf] %vm692, %v674
    %708 = vst.msk [vmem:[%s13 + $0x3c] sm:$0xf] %vm692, %v675
    %v709 = vld [vmem:[%s5] sm:$0xf]
    %v710 = vld [vmem:[%s5 + $0x4] sm:$0xf]
    %v711 = vld [vmem:[%s5 + $0x8] sm:$0xf]
    %v712 = vld [vmem:[%s5 + $0xc] sm:$0xf]
    %v713 = vld [vmem:[%s5 + $0x10] sm:$0xf]
    %v714 = vld [vmem:[%s5 + $0x14] sm:$0xf]
    %v715 = vld [vmem:[%s5 + $0x18] sm:$0xf]
    %v716 = vld [vmem:[%s5 + $0x1c] sm:$0xf]
    %v717 = vld [vmem:[%s5 + $0x20] sm:$0xf]
    %v718 = vld [vmem:[%s5 + $0x24] sm:$0xf]
    %v719 = vld [vmem:[%s5 + $0x28] sm:$0xf]
    %v720 = vld [vmem:[%s5 + $0x2c] sm:$0xf]
    %v721 = vld [vmem:[%s5 + $0x30] sm:$0xf]
    %v722 = vld [vmem:[%s5 + $0x34] sm:$0xf]
    %v723 = vld [vmem:[%s5 + $0x38] sm:$0xf]
    %v724 = vld [vmem:[%s5 + $0x3c] sm:$0xf]
    %v725 = vld [vmem:[%s7] sm:$0xf]
    %v726 = vld [vmem:[%s7 + $0x4] sm:$0xf]
    %v727 = vld [vmem:[%s7 + $0x8] sm:$0xf]
    %v728 = vld [vmem:[%s7 + $0xc] sm:$0xf]
    %v729 = vld [vmem:[%s7 + $0x10] sm:$0xf]
    %v730 = vld [vmem:[%s7 + $0x14] sm:$0xf]
    %v731 = vld [vmem:[%s7 + $0x18] sm:$0xf]
    %v732 = vld [vmem:[%s7 + $0x1c] sm:$0xf]
    %v733 = vld [vmem:[%s8] sm:$0xf]
    %v734 = vld [vmem:[%s8 + $0x4] sm:$0xf]
    %v735 = vld [vmem:[%s8 + $0x8] sm:$0xf]
    %v736 = vld [vmem:[%s8 + $0xc] sm:$0xf]
    %v741 = vunpack.c.l.b16 %v733
    %v742 = vunpack.c.l.b16 %v734
    %v743 = vunpack.c.l.b16 %v735
    %v744 = vunpack.c.l.b16 %v736
    %v745 = vpack.c.b16 %v742, %v741
    %v746 = vpack.c.b16 %v744, %v743
    %v750 = vsel %vm105, %v628, 0
    %v753 = vsel %vm105, %v629, 0
    %v756 = vsel %vm105, %v630, 0
    %v759 = vsel %vm105, %v631, 0
    %v762 = vsel %vm105, %v632, 0
    %v765 = vsel %vm105, %v633, 0
    %v768 = vsel %vm105, %v634, 0
    %v771 = vsel %vm105, %v635, 0
    %773 = vmatprep.subr.bf16.mxu0 0
    %774 = vmatpush1.bf16.msra.mxu0 0
    %775 = vmatprep.subr.bf16.mxu0 0
    %776 = vmatpush1.bf16.msra.mxu0 0
    %777 = vmatprep.subr.bf16.mxu0 0
    %778 = vmatpush1.bf16.msra.mxu0 0
    %779 = vmatprep.subr.bf16.mxu0 0
    %780 = vmatpush1.bf16.msra.mxu0 0
    %781 = vmatprep.subr.bf16.mxu0 0
    %782 = vmatpush1.bf16.msra.mxu0 0
    %783 = vmatprep.subr.bf16.mxu0 0
    %784 = vmatpush1.bf16.msra.mxu0 0
    %785 = vmatprep.subr.bf16.mxu0 0
    %786 = vmatpush1.bf16.msra.mxu0 %v746
    %787 = vmatprep.subr.bf16.mxu0 0
    %788 = vmatpush1.bf16.msra.mxu0 %v745
    %789 = vmatprep.subr.bf16.mxu0 0
    %790 = vmatpush2.bf16.msra.mxu0 0
    %791 = vmatprep.subr.bf16.mxu0 0
    %792 = vmatpush2.bf16.msra.mxu0 0
    %793 = vmatprep.subr.bf16.mxu0 0
    %794 = vmatpush2.bf16.msra.mxu0 0
    %795 = vmatprep.subr.bf16.mxu0 0
    %796 = vmatpush2.bf16.msra.mxu0 0
    %797 = vmatprep.subr.bf16.mxu0 0
    %798 = vmatpush2.bf16.msra.mxu0 0
    %799 = vmatprep.subr.bf16.mxu0 0
    %800 = vmatpush2.bf16.msra.mxu0 0
    %801 = vmatprep.subr.bf16.mxu0 0
    %802 = vmatpush2.bf16.msra.mxu0 0
    %803 = vmatprep.subr.bf16.mxu0 0
    %804 = vmatpush2.bf16.msra.mxu0 0
    %805 = vmatprep.mubr.bf16.mxu0 0
    %806 = vmatmul.mubr.bf16.gmra.mxu0 %v750
    %v807 = vpop.f32.mrf.mxu0
    %v808 = vadd.f32 0.0, %v807
    %v809 = vpop.f32.mrf.mxu0
    %v810 = vpop.f32.mrf.mxu0
    %v811 = vadd.f32 0.0, %v810
    %v812 = vpop.f32.mrf.mxu0
    %813 = vmatprep.mubr.bf16.mxu0 0
    %814 = vmatmul.mubr.bf16.gmra.mxu0 %v753
    %v815 = vpop.f32.mrf.mxu0
    %v816 = vadd.f32 0.0, %v815
    %v817 = vpop.f32.mrf.mxu0
    %v818 = vpop.f32.mrf.mxu0
    %v819 = vadd.f32 0.0, %v818
    %v820 = vpop.f32.mrf.mxu0
    %821 = vmatprep.mubr.bf16.mxu0 0
    %822 = vmatmul.mubr.bf16.gmra.mxu0 %v756
    %v823 = vpop.f32.mrf.mxu0
    %v824 = vadd.f32 0.0, %v823
    %v825 = vpop.f32.mrf.mxu0
    %v826 = vpop.f32.mrf.mxu0
    %v827 = vadd.f32 0.0, %v826
    %v828 = vpop.f32.mrf.mxu0
    %829 = vmatprep.mubr.bf16.mxu0 0
    %830 = vmatmul.mubr.bf16.gmra.mxu0 %v759
    %v831 = vpop.f32.mrf.mxu0
    %v832 = vadd.f32 0.0, %v831
    %v833 = vpop.f32.mrf.mxu0
    %v834 = vpop.f32.mrf.mxu0
    %v835 = vadd.f32 0.0, %v834
    %v836 = vpop.f32.mrf.mxu0
    %837 = vmatprep.mubr.bf16.mxu0 0
    %838 = vmatmul.mubr.bf16.gmra.mxu0 %v762
    %v839 = vpop.f32.mrf.mxu0
    %v840 = vadd.f32 0.0, %v839
    %v841 = vpop.f32.mrf.mxu0
    %v842 = vpop.f32.mrf.mxu0
    %v843 = vadd.f32 0.0, %v842
    %v844 = vpop.f32.mrf.mxu0
    %845 = vmatprep.mubr.bf16.mxu0 0
    %846 = vmatmul.mubr.bf16.gmra.mxu0 %v765
    %v847 = vpop.f32.mrf.mxu0
    %v848 = vadd.f32 0.0, %v847
    %v849 = vpop.f32.mrf.mxu0
    %v850 = vpop.f32.mrf.mxu0
    %v851 = vadd.f32 0.0, %v850
    %v852 = vpop.f32.mrf.mxu0
    %853 = vmatprep.mubr.bf16.mxu0 0
    %854 = vmatmul.mubr.bf16.gmra.mxu0 %v768
    %v855 = vpop.f32.mrf.mxu0
    %v856 = vadd.f32 0.0, %v855
    %v857 = vpop.f32.mrf.mxu0
    %v858 = vpop.f32.mrf.mxu0
    %v859 = vadd.f32 0.0, %v858
    %v860 = vpop.f32.mrf.mxu0
    %861 = vmatprep.mubr.bf16.mxu0 0
    %862 = vmatmul.mubr.bf16.gmra.mxu0 %v771
    %v863 = vpop.f32.mrf.mxu0
    %v864 = vadd.f32 0.0, %v863
    %v865 = vpop.f32.mrf.mxu0
    %v866 = vpop.f32.mrf.mxu0
    %v867 = vadd.f32 0.0, %v866
    %v868 = vpop.f32.mrf.mxu0
    %869 = vdwg.mxu0
    %v886 = vunpack.c.l.b16 %v709
    %v887 = vunpack.c.l.b16 %v710
    %v888 = vunpack.c.l.b16 %v711
    %v889 = vunpack.c.l.b16 %v712
    %v890 = vunpack.c.l.b16 %v713
    %v891 = vunpack.c.l.b16 %v714
    %v892 = vunpack.c.l.b16 %v715
    %v893 = vunpack.c.l.b16 %v716
    %v894 = vunpack.c.l.b16 %v717
    %v895 = vunpack.c.l.b16 %v718
    %v896 = vunpack.c.l.b16 %v719
    %v897 = vunpack.c.l.b16 %v720
    %v898 = vunpack.c.l.b16 %v721
    %v899 = vunpack.c.l.b16 %v722
    %v900 = vunpack.c.l.b16 %v723
    %v901 = vunpack.c.l.b16 %v724
    %v902 = vpack.c.b16 %v887, %v886
    %v903 = vpack.c.b16 %v889, %v888
    %v904 = vpack.c.b16 %v891, %v890
    %v905 = vpack.c.b16 %v893, %v892
    %v906 = vpack.c.b16 %v895, %v894
    %v907 = vpack.c.b16 %v897, %v896
    %v908 = vpack.c.b16 %v899, %v898
    %v909 = vpack.c.b16 %v901, %v900
    %v918 = vunpack.c.l.b16 %v725
    %v919 = vunpack.c.l.b16 %v726
    %v920 = vunpack.c.l.b16 %v727
    %v921 = vunpack.c.l.b16 %v728
    %v922 = vunpack.c.l.b16 %v729
    %v923 = vunpack.c.l.b16 %v730
    %v924 = vunpack.c.l.b16 %v731
    %v925 = vunpack.c.l.b16 %v732
    %v926 = vpack.c.b16 %v919, %v918
    %v927 = vpack.c.b16 %v921, %v920
    %v928 = vpack.c.b16 %v923, %v922
    %v929 = vpack.c.b16 %v925, %v924
    %vm934 = vcmask 523264
    %v936 = vsel %vm934, %v902, 0
    %v939 = vsel %vm934, %v903, 0
    %v942 = vsel %vm934, %v904, 0
    %v945 = vsel %vm934, %v905, 0
    %v948 = vsel %vm934, %v906, 0
    %v951 = vsel %vm934, %v907, 0
    %v954 = vsel %vm934, %v908, 0
    %v957 = vsel %vm934, %v909, 0
    %959 = vmatprep.subr.bf16.mxu0 0
    %960 = vmatpush1.bf16.msra.mxu0 0
    %961 = vmatprep.subr.bf16.mxu0 0
    %962 = vmatpush1.bf16.msra.mxu0 0
    %963 = vmatprep.subr.bf16.mxu0 0
    %964 = vmatpush1.bf16.msra.mxu0 0
    %965 = vmatprep.subr.bf16.mxu0 0
    %966 = vmatpush1.bf16.msra.mxu0 0
    %967 = vmatprep.subr.bf16.mxu0 0
    %968 = vmatpush1.bf16.msra.mxu0 %v929
    %969 = vmatprep.subr.bf16.mxu0 0
    %970 = vmatpush1.bf16.msra.mxu0 %v928
    %971 = vmatprep.subr.bf16.mxu0 0
    %972 = vmatpush1.bf16.msra.mxu0 %v927
    %973 = vmatprep.subr.bf16.mxu0 0
    %974 = vmatpush1.bf16.msra.mxu0 %v926
    %975 = vmatprep.subr.bf16.mxu0 0
    %976 = vmatpush2.bf16.msra.mxu0 0
    %977 = vmatprep.subr.bf16.mxu0 0
    %978 = vmatpush2.bf16.msra.mxu0 0
    %979 = vmatprep.subr.bf16.mxu0 0
    %980 = vmatpush2.bf16.msra.mxu0 0
    %981 = vmatprep.subr.bf16.mxu0 0
    %982 = vmatpush2.bf16.msra.mxu0 0
    %983 = vmatprep.subr.bf16.mxu0 0
    %984 = vmatpush2.bf16.msra.mxu0 0
    %985 = vmatprep.subr.bf16.mxu0 0
    %986 = vmatpush2.bf16.msra.mxu0 0
    %987 = vmatprep.subr.bf16.mxu0 0
    %988 = vmatpush2.bf16.msra.mxu0 0
    %989 = vmatprep.subr.bf16.mxu0 0
    %990 = vmatpush2.bf16.msra.mxu0 0
    %991 = vmatprep.mubr.bf16.mxu0 0
    %992 = vmatmul.mubr.bf16.gmra.mxu0 %v936
    %v993 = vpop.f32.mrf.mxu0
    %v994 = vadd.f32 %v808, %v993
    %v995 = vpop.f32.mrf.mxu0
    %v996 = vpop.f32.mrf.mxu0
    %v997 = vadd.f32 %v811, %v996
    %v998 = vpop.f32.mrf.mxu0
    %999 = vmatprep.mubr.bf16.mxu0 0
    %1000 = vmatmul.mubr.bf16.gmra.mxu0 %v939
    %v1001 = vpop.f32.mrf.mxu0
    %v1002 = vadd.f32 %v816, %v1001
    %v1003 = vpop.f32.mrf.mxu0
    %v1004 = vpop.f32.mrf.mxu0
    %v1005 = vadd.f32 %v819, %v1004
    %v1006 = vpop.f32.mrf.mxu0
    %1007 = vmatprep.mubr.bf16.mxu0 0
    %1008 = vmatmul.mubr.bf16.gmra.mxu0 %v942
    %v1009 = vpop.f32.mrf.mxu0
    %v1010 = vadd.f32 %v824, %v1009
    %v1011 = vpop.f32.mrf.mxu0
    %v1012 = vpop.f32.mrf.mxu0
    %v1013 = vadd.f32 %v827, %v1012
    %v1014 = vpop.f32.mrf.mxu0
    %1015 = vmatprep.mubr.bf16.mxu0 0
    %1016 = vmatmul.mubr.bf16.gmra.mxu0 %v945
    %v1017 = vpop.f32.mrf.mxu0
    %v1018 = vadd.f32 %v832, %v1017
    %v1019 = vpop.f32.mrf.mxu0
    %v1020 = vpop.f32.mrf.mxu0
    %v1021 = vadd.f32 %v835, %v1020
    %v1022 = vpop.f32.mrf.mxu0
    %1023 = vmatprep.mubr.bf16.mxu0 0
    %1024 = vmatmul.mubr.bf16.gmra.mxu0 %v948
    %v1025 = vpop.f32.mrf.mxu0
    %v1026 = vadd.f32 %v840, %v1025
    %v1027 = vpop.f32.mrf.mxu0
    %v1028 = vpop.f32.mrf.mxu0
    %v1029 = vadd.f32 %v843, %v1028
    %v1030 = vpop.f32.mrf.mxu0
    %1031 = vmatprep.mubr.bf16.mxu0 0
    %1032 = vmatmul.mubr.bf16.gmra.mxu0 %v951
    %v1033 = vpop.f32.mrf.mxu0
    %v1034 = vadd.f32 %v848, %v1033
    %v1035 = vpop.f32.mrf.mxu0
    %v1036 = vpop.f32.mrf.mxu0
    %v1037 = vadd.f32 %v851, %v1036
    %v1038 = vpop.f32.mrf.mxu0
    %1039 = vmatprep.mubr.bf16.mxu0 0
    %1040 = vmatmul.mubr.bf16.gmra.mxu0 %v954
    %v1041 = vpop.f32.mrf.mxu0
    %v1042 = vadd.f32 %v856, %v1041
    %v1043 = vpop.f32.mrf.mxu0
    %v1044 = vpop.f32.mrf.mxu0
    %v1045 = vadd.f32 %v859, %v1044
    %v1046 = vpop.f32.mrf.mxu0
    %1047 = vmatprep.mubr.bf16.mxu0 0
    %1048 = vmatmul.mubr.bf16.gmra.mxu0 %v957
    %v1049 = vpop.f32.mrf.mxu0
    %v1050 = vadd.f32 %v864, %v1049
    %v1051 = vpop.f32.mrf.mxu0
    %v1052 = vpop.f32.mrf.mxu0
    %v1053 = vadd.f32 %v867, %v1052
    %v1054 = vpop.f32.mrf.mxu0
    %1055 = vdwg.mxu0
    %v1056 = vld [vmem:[%s6] sm:$0xf]
    %v1057 = vld [vmem:[%s6 + $0x4] sm:$0xf]
    %v1058 = vld [vmem:[%s6 + $0x8] sm:$0xf]
    %v1059 = vld [vmem:[%s6 + $0xc] sm:$0xf]
    %v1060 = vld [vmem:[%s6 + $0x10] sm:$0xf]
    %v1061 = vld [vmem:[%s6 + $0x14] sm:$0xf]
    %v1062 = vld [vmem:[%s6 + $0x18] sm:$0xf]
    %v1063 = vld [vmem:[%s6 + $0x1c] sm:$0xf]
    %v1064 = vld [vmem:[%s6 + $0x20] sm:$0xf]
    %v1065 = vld [vmem:[%s6 + $0x24] sm:$0xf]
    %v1066 = vld [vmem:[%s6 + $0x28] sm:$0xf]
    %v1067 = vld [vmem:[%s6 + $0x2c] sm:$0xf]
    %v1068 = vld [vmem:[%s6 + $0x30] sm:$0xf]
    %v1069 = vld [vmem:[%s6 + $0x34] sm:$0xf]
    %v1070 = vld [vmem:[%s6 + $0x38] sm:$0xf]
    %v1071 = vld [vmem:[%s6 + $0x3c] sm:$0xf]
    %v1072 = vunpack.c.l.bf16 %v1056
    %v1073 = vunpack.c.l.bf16 %v1057
    %v1074 = vunpack.c.l.bf16 %v1058
    %v1075 = vunpack.c.l.bf16 %v1059
    %v1076 = vunpack.c.l.bf16 %v1060
    %v1077 = vunpack.c.l.bf16 %v1061
    %v1078 = vunpack.c.l.bf16 %v1062
    %v1079 = vunpack.c.l.bf16 %v1063
    %v1080 = vunpack.c.l.bf16 %v1064
    %v1081 = vunpack.c.l.bf16 %v1065
    %v1082 = vunpack.c.l.bf16 %v1066
    %v1083 = vunpack.c.l.bf16 %v1067
    %v1084 = vunpack.c.l.bf16 %v1068
    %v1085 = vunpack.c.l.bf16 %v1069
    %v1086 = vunpack.c.l.bf16 %v1070
    %v1087 = vunpack.c.l.bf16 %v1071
    %v1088 = vadd.f32 %v994, %v1072
    %v1089 = vadd.f32 %v997, %v1073
    %v1090 = vadd.f32 %v1002, %v1074
    %v1091 = vadd.f32 %v1005, %v1075
    %v1092 = vadd.f32 %v1010, %v1076
    %v1093 = vadd.f32 %v1013, %v1077
    %v1094 = vadd.f32 %v1018, %v1078
    %v1095 = vadd.f32 %v1021, %v1079
    %v1096 = vadd.f32 %v1026, %v1080
    %v1097 = vadd.f32 %v1029, %v1081
    %v1098 = vadd.f32 %v1034, %v1082
    %v1099 = vadd.f32 %v1037, %v1083
    %v1100 = vadd.f32 %v1042, %v1084
    %v1101 = vadd.f32 %v1045, %v1085
    %v1102 = vadd.f32 %v1050, %v1086
    %v1103 = vadd.f32 %v1053, %v1087
    %v1104 = vld [vmem:[%s9] sm:$0x1]
    %v1106 = vlaneseq
    %v1107 = vshrl.u32 %v1106, 7
    %v1108 = vsub.s32 0, %v1107
    %v1109 = vrot.slane %v1104, %v1108
    %v1111 = vadd.f32 %v1088, %v1109
    %v1112 = vadd.f32 %v1089, %v1109
    %v1113 = vadd.f32 %v1090, %v1109
    %v1114 = vadd.f32 %v1091, %v1109
    %v1115 = vadd.f32 %v1092, %v1109
    %v1116 = vadd.f32 %v1093, %v1109
    %v1117 = vadd.f32 %v1094, %v1109
    %v1118 = vadd.f32 %v1095, %v1109
    %v1119 = vadd.f32 %v1096, %v1109
    %v1120 = vadd.f32 %v1097, %v1109
    %v1121 = vadd.f32 %v1098, %v1109
    %v1122 = vadd.f32 %v1099, %v1109
    %v1123 = vadd.f32 %v1100, %v1109
    %v1124 = vadd.f32 %v1101, %v1109
    %v1125 = vadd.f32 %v1102, %v1109
    %v1126 = vadd.f32 %v1103, %v1109
    %v1127 = vmax.f32 %v1111, 0.0
    %v1128 = vmax.f32 %v1112, 0.0
    %v1129 = vmax.f32 %v1113, 0.0
    %v1130 = vmax.f32 %v1114, 0.0
    %v1131 = vmax.f32 %v1115, 0.0
    %v1132 = vmax.f32 %v1116, 0.0
    %v1133 = vmax.f32 %v1117, 0.0
    %v1134 = vmax.f32 %v1118, 0.0
    %v1135 = vmax.f32 %v1119, 0.0
    %v1136 = vmax.f32 %v1120, 0.0
    %v1137 = vmax.f32 %v1121, 0.0
    %v1138 = vmax.f32 %v1122, 0.0
    %v1139 = vmax.f32 %v1123, 0.0
    %v1140 = vmax.f32 %v1124, 0.0
    %v1141 = vmax.f32 %v1125, 0.0
    %v1142 = vmax.f32 %v1126, 0.0
    %v1143 = vld [vmem:[%s10] sm:$0x1]
    %v1144 = vld [vmem:[%s11] sm:$0x1]
    %v1146 = vsel %vm105, %v1143, 0
    %v1149 = vsel %vm105, %v1127, 0
    %v1152 = vsel %vm105, %v1128, 0
    %v1155 = vsel %vm105, %v1129, 0
    %v1158 = vsel %vm105, %v1130, 0
    %v1161 = vsel %vm105, %v1131, 0
    %v1164 = vsel %vm105, %v1132, 0
    %v1167 = vsel %vm105, %v1133, 0
    %v1170 = vsel %vm105, %v1134, 0
    %v1173 = vsel %vm105, %v1135, 0
    %v1176 = vsel %vm105, %v1136, 0
    %v1179 = vsel %vm105, %v1137, 0
    %v1182 = vsel %vm105, %v1138, 0
    %v1185 = vsel %vm105, %v1139, 0
    %v1188 = vsel %vm105, %v1140, 0
    %v1191 = vsel %vm105, %v1141, 0
    %v1194 = vsel %vm105, %v1142, 0
    %1196 = vmatprep.subr.mxu0 0.0
    %1197 = vmatpush1.xpose.msra.mxu0 %v1194
    %1198 = vmatprep.subr.mxu0 0.0
    %1199 = vmatpush1.xpose.msra.mxu0 %v1191
    %1200 = vmatprep.subr.mxu0 0.0
    %1201 = vmatpush1.xpose.msra.mxu0 %v1188
    %1202 = vmatprep.subr.mxu0 0.0
    %1203 = vmatpush1.xpose.msra.mxu0 %v1185
    %1204 = vmatprep.subr.mxu0 0.0
    %1205 = vmatpush1.xpose.msra.mxu0 %v1182
    %1206 = vmatprep.subr.mxu0 0.0
    %1207 = vmatpush1.xpose.msra.mxu0 %v1179
    %1208 = vmatprep.subr.mxu0 0.0
    %1209 = vmatpush1.xpose.msra.mxu0 %v1176
    %1210 = vmatprep.subr.mxu0 0.0
    %1211 = vmatpush1.xpose.msra.mxu0 %v1173
    %1212 = vmatprep.subr.mxu0 0.0
    %1213 = vmatpush1.xpose.msra.mxu0 %v1170
    %1214 = vmatprep.subr.mxu0 0.0
    %1215 = vmatpush1.xpose.msra.mxu0 %v1167
    %1216 = vmatprep.subr.mxu0 0.0
    %1217 = vmatpush1.xpose.msra.mxu0 %v1164
    %1218 = vmatprep.subr.mxu0 0.0
    %1219 = vmatpush1.xpose.msra.mxu0 %v1161
    %1220 = vmatprep.subr.mxu0 0.0
    %1221 = vmatpush1.xpose.msra.mxu0 %v1158
    %1222 = vmatprep.subr.mxu0 0.0
    %1223 = vmatpush1.xpose.msra.mxu0 %v1155
    %1224 = vmatprep.subr.mxu0 0.0
    %1225 = vmatpush1.xpose.msra.mxu0 %v1152
    %1226 = vmatprep.subr.mxu0 0.0
    %1227 = vmatpush1.xpose.msra.mxu0 %v1149
    %1228 = vmatprep.subr.mxu0 0.0
    %1229 = vmatpush2.xpose.msra.mxu0 0.0
    %1230 = vmatprep.subr.mxu0 0.0
    %1231 = vmatpush2.xpose.msra.mxu0 0.0
    %1232 = vmatprep.subr.mxu0 0.0
    %1233 = vmatpush2.xpose.msra.mxu0 0.0
    %1234 = vmatprep.subr.mxu0 0.0
    %1235 = vmatpush2.xpose.msra.mxu0 0.0
    %1236 = vmatprep.subr.mxu0 0.0
    %1237 = vmatpush2.xpose.msra.mxu0 0.0
    %1238 = vmatprep.subr.mxu0 0.0
    %1239 = vmatpush2.xpose.msra.mxu0 0.0
    %1240 = vmatprep.subr.mxu0 0.0
    %1241 = vmatpush2.xpose.msra.mxu0 0.0
    %1242 = vmatprep.subr.mxu0 0.0
    %1243 = vmatpush2.xpose.msra.mxu0 0.0
    %1244 = vmatprep.subr.mxu0 0.0
    %1245 = vmatpush2.xpose.msra.mxu0 0.0
    %1246 = vmatprep.subr.mxu0 0.0
    %1247 = vmatpush2.xpose.msra.mxu0 0.0
    %1248 = vmatprep.subr.mxu0 0.0
    %1249 = vmatpush2.xpose.msra.mxu0 0.0
    %1250 = vmatprep.subr.mxu0 0.0
    %1251 = vmatpush2.xpose.msra.mxu0 0.0
    %1252 = vmatprep.subr.mxu0 0.0
    %1253 = vmatpush2.xpose.msra.mxu0 0.0
    %1254 = vmatprep.subr.mxu0 0.0
    %1255 = vmatpush2.xpose.msra.mxu0 0.0
    %1256 = vmatprep.subr.mxu0 0.0
    %1257 = vmatpush2.xpose.msra.mxu0 0.0
    %1258 = vmatprep.subr.mxu0 0.0
    %1259 = vmatpush2.xpose.msra.mxu0 0.0
    %1260 = vmatprep.mubr.f32.mxu0 0.0
    %1261 = vmatmul.mubr.f32.gmra.mxu0 %v1146
    %v1262 = vpop.f32.mrf.mxu0
    %v1263 = vadd.f32 %v1144, %v1262
    %v1264 = vpop.f32.mrf.mxu0
    %1265 = vdwg.mxu0
    %1266 = vst [vmem:[#allocation3] sm:$0x1] %v1263
    // Predicated region
    $region50: #{tpu_custom_call.1} parent=1 // pred_check
      _
    $region51: #{tpu_custom_call.1} parent=1 // pred_check_branch
      %1268 = sbr.rel (0) target = $region53
    $region52: #{tpu_custom_call.1} parent=1 // pred_region
      %s1270 = ssub.s32 16, 16
      %1271 = vsyncadd [#allocation4], %s1270
      %s1273 = sshll.u32 [#allocation3], 4
      %s1274 = int_to_ptr.vmem [resolvable:$true] %s1273
      %1276 = dma.vmem_to_hbm [thread:$0]  %s1274, 16, %s12, [#allocation4]
    $region53: #{tpu_custom_call.1} parent=1 // pred_fallthru
      _
    // Predicated region
    $region54: #{tpu_custom_call.1} parent=1 // pred_check
      _
    $region55: #{tpu_custom_call.1} parent=1 // pred_check_branch
      %1278 = sbr.rel (0) target = $region57
    $region56: #{tpu_custom_call.1} parent=1 // pred_region
      _
    $region57: #{tpu_custom_call.1} parent=1 // pred_fallthru
      _
    // Predicated region
    $region58: #{tpu_custom_call.1} parent=1 // pred_check
      _
    $region59: #{tpu_custom_call.1} parent=1 // pred_check_branch
      %1280 = sbr.rel (0) target = $region61
    $region60: #{tpu_custom_call.1} parent=1 // pred_region
      %1281 = dma.done [#allocation4], 16
    $region61: #{tpu_custom_call.1} parent=1 // pred_fallthru
      _
    // Predicated region
    $region62: #{tpu_custom_call.1} parent=1 // pred_check
      _
    $region63: #{tpu_custom_call.1} parent=1 // pred_check_branch
      %1283 = sbr.rel (0) target = $region65
    $region64: #{tpu_custom_call.1} parent=1 // pred_region
      _
    $region65: #{tpu_custom_call.1} parent=1 // pred_fallthru
      _
    %1284 = vsyncpa [#allocation4], 1

</llo_original>
